<compile_context>
chip_gen: v7x
topology: tpu7x:2x2x1
jax: 0.10.0
libtpu: 0.0.40
codegen_flags: <defaults>
</compile_context>

<pallas_src>
import functools

import jax
import jax.numpy as jnp
from jax.experimental import pallas as pl
from jax.experimental.pallas import tpu as pltpu


def vae_kernel(Lp,
               x_ref, eps_ref,
               w1_ref, b1_ref, w2_ref, b2_ref, w3_ref, b3_ref,
               w4_ref, b4_ref, w5_ref, b5_ref, w6_ref, b6_ref,
               xhat_ref, mulv_ref):
    """Fused VAE forward for one batch tile; weights resident in VMEM.

    Lp is the (static) lane-padded latent width (multiple of 128)."""

    def mm(a, w_ref, b_ref):
        # bf16 operands, fp32 accumulation on the MXU, fp32 bias add on VPU.
        w = w_ref[...]
        return jnp.dot(a.astype(w.dtype), w,
                       preferred_element_type=jnp.float32) + b_ref[...]

    x = x_ref[...]                                    # bf16 (block_b, D)

    # ---------------- encoder ----------------
    h1 = jnp.maximum(mm(x, w1_ref, b1_ref), 0.0)
    h2 = jnp.maximum(mm(h1, w2_ref, b2_ref), 0.0)
    h3 = mm(h2, w3_ref, b3_ref)                       # (block_b, 2*Lp), fp32
    mu = h3[:, :Lp]                                   # vreg-aligned split
    log_var = h3[:, Lp:]

    # ------------- reparameterize ------------- (fp32 on VPU/EUP)
    std = jnp.exp(0.5 * log_var)                      # pad lanes -> exp(0)=1
    z = mu + eps_ref[...] * std                       # eps pad lanes are 0

    # ---------------- decoder ----------------
    d1 = jnp.maximum(mm(z, w4_ref, b4_ref), 0.0)      # w4 pad rows are 0
    d2 = jnp.maximum(mm(d1, w5_ref, b5_ref), 0.0)
    x_hat = mm(d2, w6_ref, b6_ref)

    xhat_ref[...] = x_hat.astype(xhat_ref.dtype)
    mulv_ref[...] = h3.astype(mulv_ref.dtype)         # fused mu|log_var


def _choose_tiling(B):
    """Returns (block_b, b_pad) for a 1-D batch grid."""
    if B <= 128:
        # Tiny batch: pad only to the bf16 sublane pack (16), single step.
        b_pad = pl.cdiv(B, 16) * 16
        return b_pad, b_pad
    # Large batch: block_b multiple of 128, big enough to amortize per-step
    # overhead, small enough that the grid has >= 2 parallel steps (v7x).
    block_b = 128
    for cand in (512, 256, 128):
        if B >= 2 * cand:
            block_b = cand
            break
    b_pad = pl.cdiv(B, block_b) * block_b
    return block_b, b_pad


@jax.jit
def vae_forward(x, eps, params):
    """params: 12-tuple from prepare_params(). Returns (x_hat, mu, log_var)."""
    B, input_dim = x.shape
    latent_dim = eps.shape[-1]
    Lp = params[6].shape[0]          # lane-padded latent width (from w4 rows)

    block_b, b_pad = _choose_tiling(B)

    # Input prep: bf16 x (matmul operand dtype), zero-padded rows / eps lanes.
    x = x.astype(jnp.bfloat16)
    if b_pad != B:
        x = jnp.pad(x, ((0, b_pad - B), (0, 0)))
    eps = jnp.pad(eps, ((0, b_pad - B), (0, Lp - latent_dim)))

    grid = (b_pad // block_b,)

    def act_spec(feat):
        return pl.BlockSpec((block_b, feat), lambda i: (i, 0))

    def resident_spec(p):
        # Constant block index -> weight/bias DMA'd once, reused across steps.
        return pl.BlockSpec(p.shape, lambda i: (0, 0))

    in_specs = [act_spec(input_dim), act_spec(Lp)]
    in_specs += [resident_spec(p) for p in params]
    out_specs = (act_spec(input_dim), act_spec(2 * Lp))
    out_shapes = (
        jax.ShapeDtypeStruct((b_pad, input_dim), jnp.float32),   # x_hat
        jax.ShapeDtypeStruct((b_pad, 2 * Lp), jnp.float32),      # mu | log_var
    )

    flops = 2 * b_pad * (input_dim * 512 + 512 * 256 + 256 * (2 * Lp)
                         + Lp * 256 + 256 * 512 + 512 * input_dim)
    param_bytes = sum(int(p.size) * p.dtype.itemsize for p in params)
    io_bytes = (b_pad * input_dim * 2          # x (bf16)
                + b_pad * Lp * 4               # eps
                + b_pad * input_dim * 4        # x_hat
                + b_pad * 2 * Lp * 4)          # mu|log_var
    cost = pl.CostEstimate(flops=int(flops),
                           transcendentals=int(b_pad * Lp),
                           bytes_accessed=int(param_bytes + io_bytes))

    x_hat, mulv = pl.pallas_call(
        functools.partial(vae_kernel, Lp),
        grid=grid,
        in_specs=in_specs,
        out_specs=out_specs,
        out_shape=out_shapes,
        compiler_params=pltpu.CompilerParams(
            dimension_semantics=("parallel",)),
        cost_estimate=cost,
    )(x, eps, *params)

    mu = mulv[:B, :latent_dim]
    log_var = mulv[:B, Lp:Lp + latent_dim]
    return x_hat[:B], mu, log_var


# ----------------------------------------------------------------------------
# Parameter construction / preparation
# ----------------------------------------------------------------------------
def init_linear(key, fan_in, fan_out):
    """Mirrors PyTorch nn.Linear default init (uniform +-1/sqrt(fan_in)).
    Weight stored as [fan_in, fan_out] (= W_torch.T) so the kernel does x @ W."""
    kw, kb = jax.random.split(key)
    bound = 1.0 / jnp.sqrt(fan_in)
    w = jax.random.uniform(kw, (fan_in, fan_out), jnp.float32, -bound, bound)
    b = jax.random.uniform(kb, (1, fan_out), jnp.float32, -bound, bound)
    return w, b


def make_vae_params(key, input_dim, latent_dim):
    keys = jax.random.split(key, 6)
    w1, b1 = init_linear(keys[0], input_dim, 512)
    w2, b2 = init_linear(keys[1], 512, 256)
    w3, b3 = init_linear(keys[2], 256, latent_dim * 2)
    w4, b4 = init_linear(keys[3], latent_dim, 256)
    w5, b5 = init_linear(keys[4], 256, 512)
    w6, b6 = init_linear(keys[5], 512, input_dim)
    return (w1, b1, w2, b2, w3, b3, w4, b4, w5, b5, w6, b6)


def prepare_params(params, latent_dim, matmul_dtype=jnp.bfloat16):
    """Lane-pad the latent head to a multiple of 128 (zero pads -> exact math),
    keep mu/log_var fused in one lane-aligned matmul, and cast matmul weights
    to the MXU-friendly dtype (biases stay fp32)."""
    w1, b1, w2, b2, w3, b3, w4, b4, w5, b5, w6, b6 = params
    Lp = max(128, pl.cdiv(latent_dim, 128) * 128)
    pad = Lp - latent_dim

    w3m, w3v = w3[:, :latent_dim], w3[:, latent_dim:]
    b3m, b3v = b3[:, :latent_dim], b3[:, latent_dim:]
    w3p = jnp.concatenate([jnp.pad(w3m, ((0, 0), (0, pad))),
                           jnp.pad(w3v, ((0, 0), (0, pad)))], axis=1)  # (256, 2*Lp)
    b3p = jnp.concatenate([jnp.pad(b3m, ((0, 0), (0, pad))),
                           jnp.pad(b3v, ((0, 0), (0, pad)))], axis=1)  # (1, 2*Lp)
    w4p = jnp.pad(w4, ((0, pad), (0, 0)))                              # (Lp, 256)

    cast = lambda w: w.astype(matmul_dtype)
    return (cast(w1), b1, cast(w2), b2, cast(w3p), b3p,
            cast(w4p), b4, cast(w5), b5, cast(w6), b6)


def vae_forward_ref(x, eps, prepared_params, latent_dim):
    """Plain-JAX reference with identical numerics (bf16 operands, f32 acc,
    lane-padded latent path)."""
    (w1, b1, w2, b2, w3, b3, w4, b4, w5, b5, w6, b6) = prepared_params
    Lp = w4.shape[0]
    mm = lambda a, w, b: jnp.dot(a.astype(w.dtype), w,
                                 preferred_element_type=jnp.float32) + b
    x = x.astype(jnp.bfloat16)
    eps_p = jnp.pad(eps, ((0, 0), (0, Lp - latent_dim)))
    h1 = jnp.maximum(mm(x, w1, b1), 0.0)
    h2 = jnp.maximum(mm(h1, w2, b2), 0.0)
    h3 = mm(h2, w3, b3)
    mu_f, lv_f = h3[:, :Lp], h3[:, Lp:]
    z = mu_f + eps_p * jnp.exp(0.5 * lv_f)
    d1 = jnp.maximum(mm(z, w4, b4), 0.0)
    d2 = jnp.maximum(mm(d1, w5, b5), 0.0)
    x_hat = mm(d2, w6, b6)
    return x_hat, mu_f[:, :latent_dim], lv_f[:, :latent_dim]


if __name__ == "__main__":
    input_dim = 256
    latent_dim = 32
    batch = 8

    key = jax.random.PRNGKey(0)
    k_param, k_x, k_eps = jax.random.split(key, 3)

    raw_params = make_vae_params(k_param, input_dim, latent_dim)
    params = prepare_params(raw_params, latent_dim, matmul_dtype=jnp.bfloat16)

    x = jax.random.normal(k_x, (batch, input_dim), jnp.float32)
    # eps plays the role of torch.randn_like(std); generated outside the kernel
    # so the kernel is deterministic given its inputs.
    eps = jax.random.normal(k_eps, (batch, latent_dim), jnp.float32)

    x_hat, mu, log_var = vae_forward(x, eps, params)
    jax.block_until_ready((x_hat, mu, log_var))

    # sanity check vs plain-JAX reference (same bf16-operand / f32-accumulate math)
    x_hat_r, mu_r, lv_r = vae_forward_ref(x, eps, params, latent_dim)
    assert x_hat.shape == (batch, input_dim)
    assert mu.shape == (batch, latent_dim) and log_var.shape == (batch, latent_dim)
    assert jnp.allclose(x_hat, x_hat_r, atol=1e-2, rtol=1e-2)
    assert jnp.allclose(mu, mu_r, atol=1e-2, rtol=1e-2)
    assert jnp.allclose(log_var, lv_r, atol=1e-2, rtol=1e-2)

    print("KERNEL_OK")
</pallas_src>

<mosaic_0001>
module attributes {stable_mosaic.version = 11 : i64} {
  func.func @vae_kernel(%arg0: i32, %arg1: memref<16x256xbf16, #tpu.memory_space<vmem>>, %arg2: memref<16x128xf32, #tpu.memory_space<vmem>>, %arg3: memref<256x512xbf16, #tpu.memory_space<vmem>>, %arg4: memref<1x512xf32, #tpu.memory_space<vmem>>, %arg5: memref<512x256xbf16, #tpu.memory_space<vmem>>, %arg6: memref<1x256xf32, #tpu.memory_space<vmem>>, %arg7: memref<256x256xbf16, #tpu.memory_space<vmem>>, %arg8: memref<1x256xf32, #tpu.memory_space<vmem>>, %arg9: memref<128x256xbf16, #tpu.memory_space<vmem>>, %arg10: memref<1x256xf32, #tpu.memory_space<vmem>>, %arg11: memref<256x512xbf16, #tpu.memory_space<vmem>>, %arg12: memref<1x512xf32, #tpu.memory_space<vmem>>, %arg13: memref<512x256xbf16, #tpu.memory_space<vmem>>, %arg14: memref<1x256xf32, #tpu.memory_space<vmem>>, %arg15: memref<16x256xf32, #tpu.memory_space<vmem>>, %arg16: memref<16x256xf32, #tpu.memory_space<vmem>>) attributes {dimension_semantics = [#tpu.dimension_semantics<parallel>], iteration_bounds = array<i64: 1>, scalar_prefetch = 0 : i64, scratch_operands = 0 : i64, tpu.core_type = #tpu.core_type<tc>, window_params = [{transform_indices = @transform_0, window_bounds = array<i64: 16, 256>}, {transform_indices = @transform_1, window_bounds = array<i64: 16, 128>}, {pipeline_mode = #tpu.pipeline_mode<synchronous>, transform_indices = @transform_2, window_bounds = array<i64: 256, 512>}, {pipeline_mode = #tpu.pipeline_mode<synchronous>, transform_indices = @transform_3, window_bounds = array<i64: 1, 512>}, {pipeline_mode = #tpu.pipeline_mode<synchronous>, transform_indices = @transform_4, window_bounds = array<i64: 512, 256>}, {pipeline_mode = #tpu.pipeline_mode<synchronous>, transform_indices = @transform_5, window_bounds = array<i64: 1, 256>}, {pipeline_mode = #tpu.pipeline_mode<synchronous>, transform_indices = @transform_6, window_bounds = array<i64: 256, 256>}, {pipeline_mode = #tpu.pipeline_mode<synchronous>, transform_indices = @transform_7, window_bounds = array<i64: 1, 256>}, {pipeline_mode = #tpu.pipeline_mode<synchronous>, transform_indices = @transform_8, window_bounds = array<i64: 128, 256>}, {pipeline_mode = #tpu.pipeline_mode<synchronous>, transform_indices = @transform_9, window_bounds = array<i64: 1, 256>}, {pipeline_mode = #tpu.pipeline_mode<synchronous>, transform_indices = @transform_10, window_bounds = array<i64: 256, 512>}, {pipeline_mode = #tpu.pipeline_mode<synchronous>, transform_indices = @transform_11, window_bounds = array<i64: 1, 512>}, {pipeline_mode = #tpu.pipeline_mode<synchronous>, transform_indices = @transform_12, window_bounds = array<i64: 512, 256>}, {pipeline_mode = #tpu.pipeline_mode<synchronous>, transform_indices = @transform_13, window_bounds = array<i64: 1, 256>}, {transform_indices = @transform_14, window_bounds = array<i64: 16, 256>}, {transform_indices = @transform_15, window_bounds = array<i64: 16, 256>}]} {
    %c0 = arith.constant 0 : index
    %c0_0 = arith.constant 0 : index
    %0 = vector.load %arg1[%c0, %c0_0] : memref<16x256xbf16, #tpu.memory_space<vmem>>, vector<16x256xbf16>
    %c0_1 = arith.constant 0 : index
    %c0_2 = arith.constant 0 : index
    %1 = vector.load %arg3[%c0_1, %c0_2] : memref<256x512xbf16, #tpu.memory_space<vmem>>, vector<256x512xbf16>
    %cst = arith.constant dense<0.000000e+00> : vector<16x512xf32>
    %2 = tpu.matmul %0, %1, %cst {dimension_numbers = #tpu.dot_dimension_numbers<[1], [0], [0], [1], [0, 0, 1, 1], [], []>} : vector<16x256xbf16>, vector<256x512xbf16>, vector<16x512xf32> -> vector<16x512xf32>
    %c0_3 = arith.constant 0 : index
    %c0_4 = arith.constant 0 : index
    %3 = vector.load %arg4[%c0_3, %c0_4] : memref<1x512xf32, #tpu.memory_space<vmem>>, vector<1x512xf32>
    %4 = vector.broadcast %3 : vector<1x512xf32> to vector<16x512xf32>
    %5 = arith.addf %2, %4 : vector<16x512xf32>
    %cst_5 = arith.constant 0.000000e+00 : f32
    %6 = vector.broadcast %cst_5 : f32 to vector<16x512xf32>
    %7 = arith.maximumf %5, %6 : vector<16x512xf32>
    %c0_6 = arith.constant 0 : index
    %c0_7 = arith.constant 0 : index
    %8 = vector.load %arg5[%c0_6, %c0_7] : memref<512x256xbf16, #tpu.memory_space<vmem>>, vector<512x256xbf16>
    %9 = arith.truncf %7 : vector<16x512xf32> to vector<16x512xbf16>
    %cst_8 = arith.constant dense<0.000000e+00> : vector<16x256xf32>
    %10 = tpu.matmul %9, %8, %cst_8 {dimension_numbers = #tpu.dot_dimension_numbers<[1], [0], [0], [1], [0, 0, 1, 1], [], []>} : vector<16x512xbf16>, vector<512x256xbf16>, vector<16x256xf32> -> vector<16x256xf32>
    %c0_9 = arith.constant 0 : index
    %c0_10 = arith.constant 0 : index
    %11 = vector.load %arg6[%c0_9, %c0_10] : memref<1x256xf32, #tpu.memory_space<vmem>>, vector<1x256xf32>
    %12 = vector.broadcast %11 : vector<1x256xf32> to vector<16x256xf32>
    %13 = arith.addf %10, %12 : vector<16x256xf32>
    %cst_11 = arith.constant 0.000000e+00 : f32
    %14 = vector.broadcast %cst_11 : f32 to vector<16x256xf32>
    %15 = arith.maximumf %13, %14 : vector<16x256xf32>
    %c0_12 = arith.constant 0 : index
    %c0_13 = arith.constant 0 : index
    %16 = vector.load %arg7[%c0_12, %c0_13] : memref<256x256xbf16, #tpu.memory_space<vmem>>, vector<256x256xbf16>
    %17 = arith.truncf %15 : vector<16x256xf32> to vector<16x256xbf16>
    %cst_14 = arith.constant dense<0.000000e+00> : vector<16x256xf32>
    %18 = tpu.matmul %17, %16, %cst_14 {dimension_numbers = #tpu.dot_dimension_numbers<[1], [0], [0], [1], [0, 0, 1, 1], [], []>} : vector<16x256xbf16>, vector<256x256xbf16>, vector<16x256xf32> -> vector<16x256xf32>
    %c0_15 = arith.constant 0 : index
    %c0_16 = arith.constant 0 : index
    %19 = vector.load %arg8[%c0_15, %c0_16] : memref<1x256xf32, #tpu.memory_space<vmem>>, vector<1x256xf32>
    %20 = vector.broadcast %19 : vector<1x256xf32> to vector<16x256xf32>
    %21 = arith.addf %18, %20 : vector<16x256xf32>
    %22 = vector.extract_strided_slice %21 {offsets = [0, 0], sizes = [16, 128], strides = [1, 1]} : vector<16x256xf32> to vector<16x128xf32>
    %23 = vector.extract_strided_slice %21 {offsets = [0, 128], sizes = [16, 128], strides = [1, 1]} : vector<16x256xf32> to vector<16x128xf32>
    %cst_17 = arith.constant 5.000000e-01 : f32
    %24 = vector.broadcast %cst_17 : f32 to vector<16x128xf32>
    %25 = arith.mulf %24, %23 : vector<16x128xf32>
    %26 = math.exp %25 : vector<16x128xf32>
    %c0_18 = arith.constant 0 : index
    %c0_19 = arith.constant 0 : index
    %27 = vector.load %arg2[%c0_18, %c0_19] : memref<16x128xf32, #tpu.memory_space<vmem>>, vector<16x128xf32>
    %28 = arith.mulf %27, %26 : vector<16x128xf32>
    %29 = arith.addf %22, %28 : vector<16x128xf32>
    %c0_20 = arith.constant 0 : index
    %c0_21 = arith.constant 0 : index
    %30 = vector.load %arg9[%c0_20, %c0_21] : memref<128x256xbf16, #tpu.memory_space<vmem>>, vector<128x256xbf16>
    %31 = arith.truncf %29 : vector<16x128xf32> to vector<16x128xbf16>
    %cst_22 = arith.constant dense<0.000000e+00> : vector<16x256xf32>
    %32 = tpu.matmul %31, %30, %cst_22 {dimension_numbers = #tpu.dot_dimension_numbers<[1], [0], [0], [1], [0, 0, 1, 1], [], []>} : vector<16x128xbf16>, vector<128x256xbf16>, vector<16x256xf32> -> vector<16x256xf32>
    %c0_23 = arith.constant 0 : index
    %c0_24 = arith.constant 0 : index
    %33 = vector.load %arg10[%c0_23, %c0_24] : memref<1x256xf32, #tpu.memory_space<vmem>>, vector<1x256xf32>
    %34 = vector.broadcast %33 : vector<1x256xf32> to vector<16x256xf32>
    %35 = arith.addf %32, %34 : vector<16x256xf32>
    %cst_25 = arith.constant 0.000000e+00 : f32
    %36 = vector.broadcast %cst_25 : f32 to vector<16x256xf32>
    %37 = arith.maximumf %35, %36 : vector<16x256xf32>
    %c0_26 = arith.constant 0 : index
    %c0_27 = arith.constant 0 : index
    %38 = vector.load %arg11[%c0_26, %c0_27] : memref<256x512xbf16, #tpu.memory_space<vmem>>, vector<256x512xbf16>
    %39 = arith.truncf %37 : vector<16x256xf32> to vector<16x256xbf16>
    %cst_28 = arith.constant dense<0.000000e+00> : vector<16x512xf32>
    %40 = tpu.matmul %39, %38, %cst_28 {dimension_numbers = #tpu.dot_dimension_numbers<[1], [0], [0], [1], [0, 0, 1, 1], [], []>} : vector<16x256xbf16>, vector<256x512xbf16>, vector<16x512xf32> -> vector<16x512xf32>
    %c0_29 = arith.constant 0 : index
    %c0_30 = arith.constant 0 : index
    %41 = vector.load %arg12[%c0_29, %c0_30] : memref<1x512xf32, #tpu.memory_space<vmem>>, vector<1x512xf32>
    %42 = vector.broadcast %41 : vector<1x512xf32> to vector<16x512xf32>
    %43 = arith.addf %40, %42 : vector<16x512xf32>
    %cst_31 = arith.constant 0.000000e+00 : f32
    %44 = vector.broadcast %cst_31 : f32 to vector<16x512xf32>
    %45 = arith.maximumf %43, %44 : vector<16x512xf32>
    %c0_32 = arith.constant 0 : index
    %c0_33 = arith.constant 0 : index
    %46 = vector.load %arg13[%c0_32, %c0_33] : memref<512x256xbf16, #tpu.memory_space<vmem>>, vector<512x256xbf16>
    %47 = arith.truncf %45 : vector<16x512xf32> to vector<16x512xbf16>
    %cst_34 = arith.constant dense<0.000000e+00> : vector<16x256xf32>
    %48 = tpu.matmul %47, %46, %cst_34 {dimension_numbers = #tpu.dot_dimension_numbers<[1], [0], [0], [1], [0, 0, 1, 1], [], []>} : vector<16x512xbf16>, vector<512x256xbf16>, vector<16x256xf32> -> vector<16x256xf32>
    %c0_35 = arith.constant 0 : index
    %c0_36 = arith.constant 0 : index
    %49 = vector.load %arg14[%c0_35, %c0_36] : memref<1x256xf32, #tpu.memory_space<vmem>>, vector<1x256xf32>
    %50 = vector.broadcast %49 : vector<1x256xf32> to vector<16x256xf32>
    %51 = arith.addf %48, %50 : vector<16x256xf32>
    %c0_37 = arith.constant 0 : index
    %c0_38 = arith.constant 0 : index
    %52 = vector.load %arg15[%c0_37, %c0_38] : memref<16x256xf32, #tpu.memory_space<vmem>>, vector<16x256xf32>
    tpu.vector_store %arg15[%c0_37, %c0_38], %51 {strides = array<i32>} : memref<16x256xf32, #tpu.memory_space<vmem>>, vector<16x256xf32>,
    %c0_39 = arith.constant 0 : index
    %c0_40 = arith.constant 0 : index
    %53 = vector.load %arg16[%c0_39, %c0_40] : memref<16x256xf32, #tpu.memory_space<vmem>>, vector<16x256xf32>
    tpu.vector_store %arg16[%c0_39, %c0_40], %21 {strides = array<i32>} : memref<16x256xf32, #tpu.memory_space<vmem>>, vector<16x256xf32>,
    return
  }
  func.func @transform_0(%arg0: i32) -> (i32, i32) {
    %c0_i32 = arith.constant 0 : i32
    %c0_i32_0 = arith.constant 0 : i32
    return %arg0, %c0_i32 : i32, i32
  }
  func.func @transform_1(%arg0: i32) -> (i32, i32) {
    %c0_i32 = arith.constant 0 : i32
    %c0_i32_0 = arith.constant 0 : i32
    return %arg0, %c0_i32 : i32, i32
  }
  func.func @transform_2(%arg0: i32) -> (i32, i32) {
    %c0_i32 = arith.constant 0 : i32
    %c0_i32_0 = arith.constant 0 : i32
    %c0_i32_1 = arith.constant 0 : i32
    return %c0_i32, %c0_i32_0 : i32, i32
  }
  func.func @transform_3(%arg0: i32) -> (i32, i32) {
    %c0_i32 = arith.constant 0 : i32
    %c0_i32_0 = arith.constant 0 : i32
    %c0_i32_1 = arith.constant 0 : i32
    return %c0_i32, %c0_i32_0 : i32, i32
  }
  func.func @transform_4(%arg0: i32) -> (i32, i32) {
    %c0_i32 = arith.constant 0 : i32
    %c0_i32_0 = arith.constant 0 : i32
    %c0_i32_1 = arith.constant 0 : i32
    return %c0_i32, %c0_i32_0 : i32, i32
  }
  func.func @transform_5(%arg0: i32) -> (i32, i32) {
    %c0_i32 = arith.constant 0 : i32
    %c0_i32_0 = arith.constant 0 : i32
    %c0_i32_1 = arith.constant 0 : i32
    return %c0_i32, %c0_i32_0 : i32, i32
  }
  func.func @transform_6(%arg0: i32) -> (i32, i32) {
    %c0_i32 = arith.constant 0 : i32
    %c0_i32_0 = arith.constant 0 : i32
    %c0_i32_1 = arith.constant 0 : i32
    return %c0_i32, %c0_i32_0 : i32, i32
  }
  func.func @transform_7(%arg0: i32) -> (i32, i32) {
    %c0_i32 = arith.constant 0 : i32
    %c0_i32_0 = arith.constant 0 : i32
    %c0_i32_1 = arith.constant 0 : i32
    return %c0_i32, %c0_i32_0 : i32, i32
  }
  func.func @transform_8(%arg0: i32) -> (i32, i32) {
    %c0_i32 = arith.constant 0 : i32
    %c0_i32_0 = arith.constant 0 : i32
    %c0_i32_1 = arith.constant 0 : i32
    return %c0_i32, %c0_i32_0 : i32, i32
  }
  func.func @transform_9(%arg0: i32) -> (i32, i32) {
    %c0_i32 = arith.constant 0 : i32
    %c0_i32_0 = arith.constant 0 : i32
    %c0_i32_1 = arith.constant 0 : i32
    return %c0_i32, %c0_i32_0 : i32, i32
  }
  func.func @transform_10(%arg0: i32) -> (i32, i32) {
    %c0_i32 = arith.constant 0 : i32
    %c0_i32_0 = arith.constant 0 : i32
    %c0_i32_1 = arith.constant 0 : i32
    return %c0_i32, %c0_i32_0 : i32, i32
  }
  func.func @transform_11(%arg0: i32) -> (i32, i32) {
    %c0_i32 = arith.constant 0 : i32
    %c0_i32_0 = arith.constant 0 : i32
    %c0_i32_1 = arith.constant 0 : i32
    return %c0_i32, %c0_i32_0 : i32, i32
  }
  func.func @transform_12(%arg0: i32) -> (i32, i32) {
    %c0_i32 = arith.constant 0 : i32
    %c0_i32_0 = arith.constant 0 : i32
    %c0_i32_1 = arith.constant 0 : i32
    return %c0_i32, %c0_i32_0 : i32, i32
  }
  func.func @transform_13(%arg0: i32) -> (i32, i32) {
    %c0_i32 = arith.constant 0 : i32
    %c0_i32_0 = arith.constant 0 : i32
    %c0_i32_1 = arith.constant 0 : i32
    return %c0_i32, %c0_i32_0 : i32, i32
  }
  func.func @transform_14(%arg0: i32) -> (i32, i32) {
    %c0_i32 = arith.constant 0 : i32
    %c0_i32_0 = arith.constant 0 : i32
    return %arg0, %c0_i32 : i32, i32
  }
  func.func @transform_15(%arg0: i32) -> (i32, i32) {
    %c0_i32 = arith.constant 0 : i32
    %c0_i32_0 = arith.constant 0 : i32
    return %arg0, %c0_i32 : i32, i32
  }
}

</mosaic_0001>

<llo_original>
// kernel: vae_forward.1
$region0: #{vae_forward.1}
  #allocation0 [shape = 'u32[]', space=smem, size = 0x4, offset = 0x4, fixed_abs, tag = 'smem constant byte address 0x4 - core index']
  #allocation1 [shape = 'u32[144,128]{1,0:T(1,128)}', space=vmem, size = 0x12000, scoped, tag = 'internal scratch']
  %s0 = inlined_call_operand.vmem [shape: bf16[16,256], index: 0, kind: input, shape index: {}]
  %s1 = inlined_call_operand.vmem [shape: f32[16,128], index: 1, kind: input, shape index: {}]
  %s2 = inlined_call_operand.hbm [shape: bf16[256,512], index: 2, kind: input, shape index: {}]
  %s3 = inlined_call_operand.vmem [shape: f32[1,512], index: 3, kind: input, shape index: {}]
  %s4 = inlined_call_operand.hbm [shape: bf16[512,256], index: 4, kind: input, shape index: {}]
  %s5 = inlined_call_operand.vmem [shape: f32[1,256], index: 5, kind: input, shape index: {}]
  %s6 = inlined_call_operand.hbm [shape: bf16[256,256], index: 6, kind: input, shape index: {}]
  %s7 = inlined_call_operand.vmem [shape: f32[1,256], index: 7, kind: input, shape index: {}]
  %s8 = inlined_call_operand.hbm [shape: bf16[128,256], index: 8, kind: input, shape index: {}]
  %s9 = inlined_call_operand.vmem [shape: f32[1,256], index: 9, kind: input, shape index: {}]
  %s10 = inlined_call_operand.hbm [shape: bf16[256,512], index: 10, kind: input, shape index: {}]
  %s11 = inlined_call_operand.vmem [shape: f32[1,512], index: 11, kind: input, shape index: {}]
  %s12 = inlined_call_operand.hbm [shape: bf16[512,256], index: 12, kind: input, shape index: {}]
  %s13 = inlined_call_operand.vmem [shape: f32[1,256], index: 13, kind: input, shape index: {}]
  %s14 = inlined_call_operand.vmem [shape: f32[16,256], index: 14, kind: output, shape index: {0}]
  %s15 = inlined_call_operand.vmem [shape: f32[16,256], index: 15, kind: output, shape index: {1}]
  %16 = xla_tuple %s14, %s15
  %s17 = sld [smem:[#allocation0]]
  $region98: #{vae_forward.1} parent=0
    _
  %s19 = ssub.s32 1, %s17
  %s20 = scalar_select 0, %s19, %s17
  $region1: #{vae_forward.1} parent=0
    #allocation2 [shape = 'u8[262144]{0}', space=vmem, size = 0x40000, scoped, tag = 'input window, operand 2, single buffered']
    #allocation3 [shape = 's32[1]{0}', space=sflag, size = 0x4, scoped, tag = 'scoped memory for vae_forward.1']
    #allocation4 [shape = 'u8[262144]{0}', space=vmem, size = 0x40000, scoped, tag = 'input window, operand 4, single buffered']
    #allocation5 [shape = 's32[1]{0}', space=sflag, size = 0x4, scoped, tag = 'scoped memory for vae_forward.1']
    #allocation6 [shape = 'u8[131072]{0}', space=vmem, size = 0x20000, scoped, tag = 'input window, operand 6, single buffered']
    #allocation7 [shape = 'u8[65536]{0}', space=vmem, size = 0x10000, scoped, tag = 'input window, operand 8, single buffered']
    #allocation8 [shape = 's32[1]{0}', space=sflag, size = 0x4, scoped, tag = 'scoped memory for vae_forward.1']
    #allocation9 [shape = 'u8[262144]{0}', space=vmem, size = 0x40000, scoped, tag = 'input window, operand 10, single buffered']
    #allocation10 [shape = 'u8[262144]{0}', space=vmem, size = 0x40000, scoped, tag = 'input window, operand 12, single buffered']
    #allocation11 [shape = 's32[1]{0}', space=sflag, size = 0x4, scoped, tag = 'scoped memory for vae_forward.1']
    %21 = vsyncpa [#allocation3], 0
    %22 = vsyncpa [#allocation5], 0
    %23 = vsyncpa [#allocation8], 0
    %24 = vsyncpa [#allocation11], 0
    // Predicated region
    $region2: #{vae_forward.1} parent=1 // pred_check
      _
    $region3: #{vae_forward.1} parent=1 // pred_check_branch
      %26 = sbr.rel (0) target = $region5
    $region4: #{vae_forward.1} parent=1 // pred_region
      _
    $region5: #{vae_forward.1} parent=1 // pred_fallthru
      _
    // Predicated region
    $region6: #{vae_forward.1} parent=1 // pred_check
      _
    $region7: #{vae_forward.1} parent=1 // pred_check_branch
      %28 = sbr.rel (0) target = $region9
    $region8: #{vae_forward.1} parent=1 // pred_region
      _
    $region9: #{vae_forward.1} parent=1 // pred_fallthru
      _
    // Predicated region
    $region10: #{vae_forward.1} parent=1 // pred_check
      _
    $region11: #{vae_forward.1} parent=1 // pred_check_branch
      %30 = sbr.rel (0) target = $region13
    $region12: #{vae_forward.1} parent=1 // pred_region
      %s32 = ssub.s32 8192, 8192
      %33 = vsyncadd [#allocation3], %s32
      %s34 = sshll.u32 [#allocation2], 4
      %s35 = int_to_ptr.vmem [resolvable:$true] %s34
      %40 = dma.hbm_to_vmem [thread:$0]  %s2, 8192, %s35, [#allocation3], 256, 256, 16
    $region13: #{vae_forward.1} parent=1 // pred_fallthru
      _
    // Predicated region
    $region14: #{vae_forward.1} parent=1 // pred_check
      _
    $region15: #{vae_forward.1} parent=1 // pred_check_branch
      %42 = sbr.rel (0) target = $region17
    $region16: #{vae_forward.1} parent=1 // pred_region
      _
    $region17: #{vae_forward.1} parent=1 // pred_fallthru
      _
    // Predicated region
    $region18: #{vae_forward.1} parent=1 // pred_check
      _
    $region19: #{vae_forward.1} parent=1 // pred_check_branch
      %44 = sbr.rel (0) target = $region21
    $region20: #{vae_forward.1} parent=1 // pred_region
      %s46 = ssub.s32 8192, 8192
      %47 = vsyncadd [#allocation5], %s46
      %s48 = sshll.u32 [#allocation4], 4
      %s49 = int_to_ptr.vmem [resolvable:$true] %s48
      %54 = dma.hbm_to_vmem [thread:$0]  %s4, 8192, %s49, [#allocation5], 128, 128, 8
    $region21: #{vae_forward.1} parent=1 // pred_fallthru
      _
    // Predicated region
    $region22: #{vae_forward.1} parent=1 // pred_check
      _
    $region23: #{vae_forward.1} parent=1 // pred_check_branch
      %56 = sbr.rel (0) target = $region25
    $region24: #{vae_forward.1} parent=1 // pred_region
      _
    $region25: #{vae_forward.1} parent=1 // pred_fallthru
      _
    // Predicated region
    $region26: #{vae_forward.1} parent=1 // pred_check
      _
    $region27: #{vae_forward.1} parent=1 // pred_check_branch
      %58 = sbr.rel (0) target = $region29
    $region28: #{vae_forward.1} parent=1 // pred_region
      %s60 = ssub.s32 4096, 4096
      %61 = vsyncadd [#allocation5], %s60
      %s62 = sshll.u32 [#allocation6], 4
      %s63 = int_to_ptr.vmem [resolvable:$true] %s62
      %68 = dma.hbm_to_vmem [thread:$0]  %s6, 4096, %s63, [#allocation5], 128, 128, 8
    $region29: #{vae_forward.1} parent=1 // pred_fallthru
      _
    // Predicated region
    $region30: #{vae_forward.1} parent=1 // pred_check
      _
    $region31: #{vae_forward.1} parent=1 // pred_check_branch
      %70 = sbr.rel (0) target = $region33
    $region32: #{vae_forward.1} parent=1 // pred_region
      _
    $region33: #{vae_forward.1} parent=1 // pred_fallthru
      _
    // Predicated region
    $region34: #{vae_forward.1} parent=1 // pred_check
      _
    $region35: #{vae_forward.1} parent=1 // pred_check_branch
      %72 = sbr.rel (0) target = $region37
    $region36: #{vae_forward.1} parent=1 // pred_region
      %s74 = ssub.s32 2048, 2048
      %75 = vsyncadd [#allocation8], %s74
      %s76 = sshll.u32 [#allocation7], 4
      %s77 = int_to_ptr.vmem [resolvable:$true] %s76
      %82 = dma.hbm_to_vmem [thread:$0]  %s8, 2048, %s77, [#allocation8], 128, 128, 8
    $region37: #{vae_forward.1} parent=1 // pred_fallthru
      _
    // Predicated region
    $region38: #{vae_forward.1} parent=1 // pred_check
      _
    $region39: #{vae_forward.1} parent=1 // pred_check_branch
      %84 = sbr.rel (0) target = $region41
    $region40: #{vae_forward.1} parent=1 // pred_region
      _
    $region41: #{vae_forward.1} parent=1 // pred_fallthru
      _
    // Predicated region
    $region42: #{vae_forward.1} parent=1 // pred_check
      _
    $region43: #{vae_forward.1} parent=1 // pred_check_branch
      %86 = sbr.rel (0) target = $region45
    $region44: #{vae_forward.1} parent=1 // pred_region
      %s88 = ssub.s32 8192, 8192
      %89 = vsyncadd [#allocation8], %s88
      %s90 = sshll.u32 [#allocation9], 4
      %s91 = int_to_ptr.vmem [resolvable:$true] %s90
      %96 = dma.hbm_to_vmem [thread:$0]  %s10, 8192, %s91, [#allocation8], 256, 256, 16
    $region45: #{vae_forward.1} parent=1 // pred_fallthru
      _
    // Predicated region
    $region46: #{vae_forward.1} parent=1 // pred_check
      _
    $region47: #{vae_forward.1} parent=1 // pred_check_branch
      %98 = sbr.rel (0) target = $region49
    $region48: #{vae_forward.1} parent=1 // pred_region
      _
    $region49: #{vae_forward.1} parent=1 // pred_fallthru
      _
    // Predicated region
    $region50: #{vae_forward.1} parent=1 // pred_check
      _
    $region51: #{vae_forward.1} parent=1 // pred_check_branch
      %100 = sbr.rel (0) target = $region53
    $region52: #{vae_forward.1} parent=1 // pred_region
      %s102 = ssub.s32 8192, 8192
      %103 = vsyncadd [#allocation11], %s102
      %s104 = sshll.u32 [#allocation10], 4
      %s105 = int_to_ptr.vmem [resolvable:$true] %s104
      %110 = dma.hbm_to_vmem [thread:$0]  %s12, 8192, %s105, [#allocation11], 128, 128, 8
    $region53: #{vae_forward.1} parent=1 // pred_fallthru
      _
    // Predicated region
    $region54: #{vae_forward.1} parent=1 // pred_check
      _
    $region55: #{vae_forward.1} parent=1 // pred_check_branch
      %112 = sbr.rel (0) target = $region57
    $region56: #{vae_forward.1} parent=1 // pred_region
      _
    $region57: #{vae_forward.1} parent=1 // pred_fallthru
      _
    // Predicated region
    $region58: #{vae_forward.1} parent=1 // pred_check
      _
    $region59: #{vae_forward.1} parent=1 // pred_check_branch
      %114 = sbr.rel (0) target = $region61
    $region60: #{vae_forward.1} parent=1 // pred_region
      %115 = dma.done [#allocation3], 8192
    $region61: #{vae_forward.1} parent=1 // pred_fallthru
      _
    // Predicated region
    $region62: #{vae_forward.1} parent=1 // pred_check
      _
    $region63: #{vae_forward.1} parent=1 // pred_check_branch
      %117 = sbr.rel (0) target = $region65
    $region64: #{vae_forward.1} parent=1 // pred_region
      %118 = dma.done [#allocation5], 8192
    $region65: #{vae_forward.1} parent=1 // pred_fallthru
      _
    // Predicated region
    $region66: #{vae_forward.1} parent=1 // pred_check
      _
    $region67: #{vae_forward.1} parent=1 // pred_check_branch
      %120 = sbr.rel (0) target = $region69
    $region68: #{vae_forward.1} parent=1 // pred_region
      %121 = dma.done [#allocation5], 4096
    $region69: #{vae_forward.1} parent=1 // pred_fallthru
      _
    // Predicated region
    $region70: #{vae_forward.1} parent=1 // pred_check
      _
    $region71: #{vae_forward.1} parent=1 // pred_check_branch
      %123 = sbr.rel (0) target = $region73
    $region72: #{vae_forward.1} parent=1 // pred_region
      %124 = dma.done [#allocation8], 2048
    $region73: #{vae_forward.1} parent=1 // pred_fallthru
      _
    // Predicated region
    $region74: #{vae_forward.1} parent=1 // pred_check
      _
    $region75: #{vae_forward.1} parent=1 // pred_check_branch
      %126 = sbr.rel (0) target = $region77
    $region76: #{vae_forward.1} parent=1 // pred_region
      %127 = dma.done [#allocation8], 8192
    $region77: #{vae_forward.1} parent=1 // pred_fallthru
      _
    // Predicated region
    $region78: #{vae_forward.1} parent=1 // pred_check
      _
    $region79: #{vae_forward.1} parent=1 // pred_check_branch
      %129 = sbr.rel (0) target = $region81
    $region80: #{vae_forward.1} parent=1 // pred_region
      %130 = dma.done [#allocation11], 8192
    $region81: #{vae_forward.1} parent=1 // pred_fallthru
      _
    %v132 = vld [vmem:[%s0] sm:$0xff]
    %v133 = vld [vmem:[%s0 + $0x8] sm:$0xff]
    %v134 = vld [vmem:[#allocation2] sm:$0xff]
    %v135 = vld [vmem:[#allocation2 + $0x8] sm:$0xff]
    %v136 = vld [vmem:[#allocation2 + $0x10] sm:$0xff]
    %v137 = vld [vmem:[#allocation2 + $0x18] sm:$0xff]
    %v138 = vld [vmem:[#allocation2 + $0x20] sm:$0xff]
    %v139 = vld [vmem:[#allocation2 + $0x28] sm:$0xff]
    %v140 = vld [vmem:[#allocation2 + $0x30] sm:$0xff]
    %v141 = vld [vmem:[#allocation2 + $0x38] sm:$0xff]
    %v142 = vld [vmem:[#allocation2 + $0x40] sm:$0xff]
    %v143 = vld [vmem:[#allocation2 + $0x48] sm:$0xff]
    %v144 = vld [vmem:[#allocation2 + $0x50] sm:$0xff]
    %v145 = vld [vmem:[#allocation2 + $0x58] sm:$0xff]
    %v146 = vld [vmem:[#allocation2 + $0x60] sm:$0xff]
    %v147 = vld [vmem:[#allocation2 + $0x68] sm:$0xff]
    %v148 = vld [vmem:[#allocation2 + $0x70] sm:$0xff]
    %v149 = vld [vmem:[#allocation2 + $0x78] sm:$0xff]
    %v150 = vld [vmem:[#allocation2 + $0x80] sm:$0xff]
    %v151 = vld [vmem:[#allocation2 + $0x88] sm:$0xff]
    %v152 = vld [vmem:[#allocation2 + $0x90] sm:$0xff]
    %v153 = vld [vmem:[#allocation2 + $0x98] sm:$0xff]
    %v154 = vld [vmem:[#allocation2 + $0xa0] sm:$0xff]
    %v155 = vld [vmem:[#allocation2 + $0xa8] sm:$0xff]
    %v156 = vld [vmem:[#allocation2 + $0xb0] sm:$0xff]
    %v157 = vld [vmem:[#allocation2 + $0xb8] sm:$0xff]
    %v158 = vld [vmem:[#allocation2 + $0xc0] sm:$0xff]
    %v159 = vld [vmem:[#allocation2 + $0xc8] sm:$0xff]
    %v160 = vld [vmem:[#allocation2 + $0xd0] sm:$0xff]
    %v161 = vld [vmem:[#allocation2 + $0xd8] sm:$0xff]
    %v162 = vld [vmem:[#allocation2 + $0xe0] sm:$0xff]
    %v163 = vld [vmem:[#allocation2 + $0xe8] sm:$0xff]
    %v164 = vld [vmem:[#allocation2 + $0xf0] sm:$0xff]
    %v165 = vld [vmem:[#allocation2 + $0xf8] sm:$0xff]
    %v166 = vld [vmem:[#allocation2 + $0x100] sm:$0xff]
    %v167 = vld [vmem:[#allocation2 + $0x108] sm:$0xff]
    %v168 = vld [vmem:[#allocation2 + $0x110] sm:$0xff]
    %v169 = vld [vmem:[#allocation2 + $0x118] sm:$0xff]
    %v170 = vld [vmem:[#allocation2 + $0x120] sm:$0xff]
    %v171 = vld [vmem:[#allocation2 + $0x128] sm:$0xff]
    %v172 = vld [vmem:[#allocation2 + $0x130] sm:$0xff]
    %v173 = vld [vmem:[#allocation2 + $0x138] sm:$0xff]
    %v174 = vld [vmem:[#allocation2 + $0x140] sm:$0xff]
    %v175 = vld [vmem:[#allocation2 + $0x148] sm:$0xff]
    %v176 = vld [vmem:[#allocation2 + $0x150] sm:$0xff]
    %v177 = vld [vmem:[#allocation2 + $0x158] sm:$0xff]
    %v178 = vld [vmem:[#allocation2 + $0x160] sm:$0xff]
    %v179 = vld [vmem:[#allocation2 + $0x168] sm:$0xff]
    %v180 = vld [vmem:[#allocation2 + $0x170] sm:$0xff]
    %v181 = vld [vmem:[#allocation2 + $0x178] sm:$0xff]
    %v182 = vld [vmem:[#allocation2 + $0x180] sm:$0xff]
    %v183 = vld [vmem:[#allocation2 + $0x188] sm:$0xff]
    %v184 = vld [vmem:[#allocation2 + $0x190] sm:$0xff]
    %v185 = vld [vmem:[#allocation2 + $0x198] sm:$0xff]
    %v186 = vld [vmem:[#allocation2 + $0x1a0] sm:$0xff]
    %v187 = vld [vmem:[#allocation2 + $0x1a8] sm:$0xff]
    %v188 = vld [vmem:[#allocation2 + $0x1b0] sm:$0xff]
    %v189 = vld [vmem:[#allocation2 + $0x1b8] sm:$0xff]
    %v190 = vld [vmem:[#allocation2 + $0x1c0] sm:$0xff]
    %v191 = vld [vmem:[#allocation2 + $0x1c8] sm:$0xff]
    %v192 = vld [vmem:[#allocation2 + $0x1d0] sm:$0xff]
    %v193 = vld [vmem:[#allocation2 + $0x1d8] sm:$0xff]
    %v194 = vld [vmem:[#allocation2 + $0x1e0] sm:$0xff]
    %v195 = vld [vmem:[#allocation2 + $0x1e8] sm:$0xff]
    %v196 = vld [vmem:[#allocation2 + $0x1f0] sm:$0xff]
    %v197 = vld [vmem:[#allocation2 + $0x1f8] sm:$0xff]
    %v198 = vld [vmem:[%s3] sm:$0xf]
    %v200 = vlaneseq
    %v201 = vshrl.u32 %v200, 7
    %v202 = vsub.s32 0, %v201
    %v203 = vrot.slane %v198, %v202
    %v204 = vlaneseq
    %v205 = vshrl.u32 %v204, 7
    %v206 = vsub.s32 1, %v205
    %v207 = vrot.slane %v198, %v206
    %v208 = vlaneseq
    %v209 = vshrl.u32 %v208, 7
    %v210 = vsub.s32 2, %v209
    %v211 = vrot.slane %v198, %v210
    %v212 = vlaneseq
    %v213 = vshrl.u32 %v212, 7
    %v214 = vsub.s32 3, %v213
    %v215 = vrot.slane %v198, %v214
    %v222 = vunpack.c.l.b16 %v132
    %v223 = vunpack.c.h.b16 %v132
    %v224 = vunpack.c.l.b16 %v133
    %v225 = vunpack.c.h.b16 %v133
    %v226 = vpack.c.b16 %v224, %v222
    %v227 = vpack.c.b16 %v225, %v223
    %v294 = vunpack.c.l.b16 %v134
    %v295 = vunpack.c.h.b16 %v134
    %v296 = vunpack.c.l.b16 %v135
    %v297 = vunpack.c.h.b16 %v135
    %v298 = vunpack.c.l.b16 %v136
    %v299 = vunpack.c.h.b16 %v136
    %v300 = vunpack.c.l.b16 %v137
    %v301 = vunpack.c.h.b16 %v137
    %v302 = vunpack.c.l.b16 %v138
    %v303 = vunpack.c.h.b16 %v138
    %v304 = vunpack.c.l.b16 %v139
    %v305 = vunpack.c.h.b16 %v139
    %v306 = vunpack.c.l.b16 %v140
    %v307 = vunpack.c.h.b16 %v140
    %v308 = vunpack.c.l.b16 %v141
    %v309 = vunpack.c.h.b16 %v141
    %v310 = vunpack.c.l.b16 %v142
    %v311 = vunpack.c.h.b16 %v142
    %v312 = vunpack.c.l.b16 %v143
    %v313 = vunpack.c.h.b16 %v143
    %v314 = vunpack.c.l.b16 %v144
    %v315 = vunpack.c.h.b16 %v144
    %v316 = vunpack.c.l.b16 %v145
    %v317 = vunpack.c.h.b16 %v145
    %v318 = vunpack.c.l.b16 %v146
    %v319 = vunpack.c.h.b16 %v146
    %v320 = vunpack.c.l.b16 %v147
    %v321 = vunpack.c.h.b16 %v147
    %v322 = vunpack.c.l.b16 %v148
    %v323 = vunpack.c.h.b16 %v148
    %v324 = vunpack.c.l.b16 %v149
    %v325 = vunpack.c.h.b16 %v149
    %v326 = vunpack.c.l.b16 %v150
    %v327 = vunpack.c.h.b16 %v150
    %v328 = vunpack.c.l.b16 %v151
    %v329 = vunpack.c.h.b16 %v151
    %v330 = vunpack.c.l.b16 %v152
    %v331 = vunpack.c.h.b16 %v152
    %v332 = vunpack.c.l.b16 %v153
    %v333 = vunpack.c.h.b16 %v153
    %v334 = vunpack.c.l.b16 %v154
    %v335 = vunpack.c.h.b16 %v154
    %v336 = vunpack.c.l.b16 %v155
    %v337 = vunpack.c.h.b16 %v155
    %v338 = vunpack.c.l.b16 %v156
    %v339 = vunpack.c.h.b16 %v156
    %v340 = vunpack.c.l.b16 %v157
    %v341 = vunpack.c.h.b16 %v157
    %v342 = vunpack.c.l.b16 %v158
    %v343 = vunpack.c.h.b16 %v158
    %v344 = vunpack.c.l.b16 %v159
    %v345 = vunpack.c.h.b16 %v159
    %v346 = vunpack.c.l.b16 %v160
    %v347 = vunpack.c.h.b16 %v160
    %v348 = vunpack.c.l.b16 %v161
    %v349 = vunpack.c.h.b16 %v161
    %v350 = vunpack.c.l.b16 %v162
    %v351 = vunpack.c.h.b16 %v162
    %v352 = vunpack.c.l.b16 %v163
    %v353 = vunpack.c.h.b16 %v163
    %v354 = vunpack.c.l.b16 %v164
    %v355 = vunpack.c.h.b16 %v164
    %v356 = vunpack.c.l.b16 %v165
    %v357 = vunpack.c.h.b16 %v165
    %v358 = vunpack.c.l.b16 %v166
    %v359 = vunpack.c.h.b16 %v166
    %v360 = vunpack.c.l.b16 %v167
    %v361 = vunpack.c.h.b16 %v167
    %v362 = vunpack.c.l.b16 %v168
    %v363 = vunpack.c.h.b16 %v168
    %v364 = vunpack.c.l.b16 %v169
    %v365 = vunpack.c.h.b16 %v169
    %v366 = vunpack.c.l.b16 %v170
    %v367 = vunpack.c.h.b16 %v170
    %v368 = vunpack.c.l.b16 %v171
    %v369 = vunpack.c.h.b16 %v171
    %v370 = vunpack.c.l.b16 %v172
    %v371 = vunpack.c.h.b16 %v172
    %v372 = vunpack.c.l.b16 %v173
    %v373 = vunpack.c.h.b16 %v173
    %v374 = vunpack.c.l.b16 %v174
    %v375 = vunpack.c.h.b16 %v174
    %v376 = vunpack.c.l.b16 %v175
    %v377 = vunpack.c.h.b16 %v175
    %v378 = vunpack.c.l.b16 %v176
    %v379 = vunpack.c.h.b16 %v176
    %v380 = vunpack.c.l.b16 %v177
    %v381 = vunpack.c.h.b16 %v177
    %v382 = vunpack.c.l.b16 %v178
    %v383 = vunpack.c.h.b16 %v178
    %v384 = vunpack.c.l.b16 %v179
    %v385 = vunpack.c.h.b16 %v179
    %v386 = vunpack.c.l.b16 %v180
    %v387 = vunpack.c.h.b16 %v180
    %v388 = vunpack.c.l.b16 %v181
    %v389 = vunpack.c.h.b16 %v181
    %v390 = vunpack.c.l.b16 %v182
    %v391 = vunpack.c.h.b16 %v182
    %v392 = vunpack.c.l.b16 %v183
    %v393 = vunpack.c.h.b16 %v183
    %v394 = vunpack.c.l.b16 %v184
    %v395 = vunpack.c.h.b16 %v184
    %v396 = vunpack.c.l.b16 %v185
    %v397 = vunpack.c.h.b16 %v185
    %v398 = vunpack.c.l.b16 %v186
    %v399 = vunpack.c.h.b16 %v186
    %v400 = vunpack.c.l.b16 %v187
    %v401 = vunpack.c.h.b16 %v187
    %v402 = vunpack.c.l.b16 %v188
    %v403 = vunpack.c.h.b16 %v188
    %v404 = vunpack.c.l.b16 %v189
    %v405 = vunpack.c.h.b16 %v189
    %v406 = vunpack.c.l.b16 %v190
    %v407 = vunpack.c.h.b16 %v190
    %v408 = vunpack.c.l.b16 %v191
    %v409 = vunpack.c.h.b16 %v191
    %v410 = vunpack.c.l.b16 %v192
    %v411 = vunpack.c.h.b16 %v192
    %v412 = vunpack.c.l.b16 %v193
    %v413 = vunpack.c.h.b16 %v193
    %v414 = vunpack.c.l.b16 %v194
    %v415 = vunpack.c.h.b16 %v194
    %v416 = vunpack.c.l.b16 %v195
    %v417 = vunpack.c.h.b16 %v195
    %v418 = vunpack.c.l.b16 %v196
    %v419 = vunpack.c.h.b16 %v196
    %v420 = vunpack.c.l.b16 %v197
    %v421 = vunpack.c.h.b16 %v197
    %v422 = vpack.c.b16 %v298, %v294
    %v423 = vpack.c.b16 %v299, %v295
    %v424 = vpack.c.b16 %v300, %v296
    %v425 = vpack.c.b16 %v301, %v297
    %v426 = vpack.c.b16 %v306, %v302
    %v427 = vpack.c.b16 %v307, %v303
    %v428 = vpack.c.b16 %v308, %v304
    %v429 = vpack.c.b16 %v309, %v305
    %v430 = vpack.c.b16 %v314, %v310
    %v431 = vpack.c.b16 %v315, %v311
    %v432 = vpack.c.b16 %v316, %v312
    %v433 = vpack.c.b16 %v317, %v313
    %v434 = vpack.c.b16 %v322, %v318
    %v435 = vpack.c.b16 %v323, %v319
    %v436 = vpack.c.b16 %v324, %v320
    %v437 = vpack.c.b16 %v325, %v321
    %v438 = vpack.c.b16 %v330, %v326
    %v439 = vpack.c.b16 %v331, %v327
    %v440 = vpack.c.b16 %v332, %v328
    %v441 = vpack.c.b16 %v333, %v329
    %v442 = vpack.c.b16 %v338, %v334
    %v443 = vpack.c.b16 %v339, %v335
    %v444 = vpack.c.b16 %v340, %v336
    %v445 = vpack.c.b16 %v341, %v337
    %v446 = vpack.c.b16 %v346, %v342
    %v447 = vpack.c.b16 %v347, %v343
    %v448 = vpack.c.b16 %v348, %v344
    %v449 = vpack.c.b16 %v349, %v345
    %v450 = vpack.c.b16 %v354, %v350
    %v451 = vpack.c.b16 %v355, %v351
    %v452 = vpack.c.b16 %v356, %v352
    %v453 = vpack.c.b16 %v357, %v353
    %v454 = vpack.c.b16 %v362, %v358
    %v455 = vpack.c.b16 %v363, %v359
    %v456 = vpack.c.b16 %v364, %v360
    %v457 = vpack.c.b16 %v365, %v361
    %v458 = vpack.c.b16 %v370, %v366
    %v459 = vpack.c.b16 %v371, %v367
    %v460 = vpack.c.b16 %v372, %v368
    %v461 = vpack.c.b16 %v373, %v369
    %v462 = vpack.c.b16 %v378, %v374
    %v463 = vpack.c.b16 %v379, %v375
    %v464 = vpack.c.b16 %v380, %v376
    %v465 = vpack.c.b16 %v381, %v377
    %v466 = vpack.c.b16 %v386, %v382
    %v467 = vpack.c.b16 %v387, %v383
    %v468 = vpack.c.b16 %v388, %v384
    %v469 = vpack.c.b16 %v389, %v385
    %v470 = vpack.c.b16 %v394, %v390
    %v471 = vpack.c.b16 %v395, %v391
    %v472 = vpack.c.b16 %v396, %v392
    %v473 = vpack.c.b16 %v397, %v393
    %v474 = vpack.c.b16 %v402, %v398
    %v475 = vpack.c.b16 %v403, %v399
    %v476 = vpack.c.b16 %v404, %v400
    %v477 = vpack.c.b16 %v405, %v401
    %v478 = vpack.c.b16 %v410, %v406
    %v479 = vpack.c.b16 %v411, %v407
    %v480 = vpack.c.b16 %v412, %v408
    %v481 = vpack.c.b16 %v413, %v409
    %v482 = vpack.c.b16 %v418, %v414
    %v483 = vpack.c.b16 %v419, %v415
    %v484 = vpack.c.b16 %v420, %v416
    %v485 = vpack.c.b16 %v421, %v417
    %550 = vmatprep.subr.bf16.mxu0 %v423
    %551 = vmatpush1.bf16.msra.mxu0 %v422
    %552 = vmatprep.subr.bf16.mxu0 %v427
    %553 = vmatpush1.bf16.msra.mxu0 %v426
    %554 = vmatprep.subr.bf16.mxu0 %v431
    %555 = vmatpush1.bf16.msra.mxu0 %v430
    %556 = vmatprep.subr.bf16.mxu0 %v435
    %557 = vmatpush1.bf16.msra.mxu0 %v434
    %558 = vmatprep.subr.bf16.mxu0 %v439
    %559 = vmatpush1.bf16.msra.mxu0 %v438
    %560 = vmatprep.subr.bf16.mxu0 %v443
    %561 = vmatpush1.bf16.msra.mxu0 %v442
    %562 = vmatprep.subr.bf16.mxu0 %v447
    %563 = vmatpush1.bf16.msra.mxu0 %v446
    %564 = vmatprep.subr.bf16.mxu0 %v451
    %565 = vmatpush1.bf16.msra.mxu0 %v450
    %566 = vmatprep.subr.bf16.mxu0 %v455
    %567 = vmatpush1.bf16.msra.mxu0 %v454
    %568 = vmatprep.subr.bf16.mxu0 %v459
    %569 = vmatpush1.bf16.msra.mxu0 %v458
    %570 = vmatprep.subr.bf16.mxu0 %v463
    %571 = vmatpush1.bf16.msra.mxu0 %v462
    %572 = vmatprep.subr.bf16.mxu0 %v467
    %573 = vmatpush1.bf16.msra.mxu0 %v466
    %574 = vmatprep.subr.bf16.mxu0 %v471
    %575 = vmatpush1.bf16.msra.mxu0 %v470
    %576 = vmatprep.subr.bf16.mxu0 %v475
    %577 = vmatpush1.bf16.msra.mxu0 %v474
    %578 = vmatprep.subr.bf16.mxu0 %v479
    %579 = vmatpush1.bf16.msra.mxu0 %v478
    %580 = vmatprep.subr.bf16.mxu0 %v483
    %581 = vmatpush1.bf16.msra.mxu0 %v482
    %582 = vmatprep.mubr.bf16.mxu0 %v227
    %583 = vmatmul.mubr.bf16.gmra.mrb[0].mxu0 %v226
    %v584 = vpop.f32.mrb[0].mxu0
    %v585 = vadd.f32 %v203, %v584
    %v586 = vpop.f32.mrb[0].mxu0
    %v587 = vadd.f32 %v207, %v586
    %v588 = vpop.f32.mrb[0].mxu0
    %v589 = vadd.f32 %v203, %v588
    %v590 = vpop.f32.mrb[0].mxu0
    %v591 = vadd.f32 %v207, %v590
    %592 = vdwg.mxu0
    %593 = vmatprep.subr.bf16.mxu0 %v425
    %594 = vmatpush1.bf16.msra.mxu0 %v424
    %595 = vmatprep.subr.bf16.mxu0 %v429
    %596 = vmatpush1.bf16.msra.mxu0 %v428
    %597 = vmatprep.subr.bf16.mxu0 %v433
    %598 = vmatpush1.bf16.msra.mxu0 %v432
    %599 = vmatprep.subr.bf16.mxu0 %v437
    %600 = vmatpush1.bf16.msra.mxu0 %v436
    %601 = vmatprep.subr.bf16.mxu0 %v441
    %602 = vmatpush1.bf16.msra.mxu0 %v440
    %603 = vmatprep.subr.bf16.mxu0 %v445
    %604 = vmatpush1.bf16.msra.mxu0 %v444
    %605 = vmatprep.subr.bf16.mxu0 %v449
    %606 = vmatpush1.bf16.msra.mxu0 %v448
    %607 = vmatprep.subr.bf16.mxu0 %v453
    %608 = vmatpush1.bf16.msra.mxu0 %v452
    %609 = vmatprep.subr.bf16.mxu0 %v457
    %610 = vmatpush1.bf16.msra.mxu0 %v456
    %611 = vmatprep.subr.bf16.mxu0 %v461
    %612 = vmatpush1.bf16.msra.mxu0 %v460
    %613 = vmatprep.subr.bf16.mxu0 %v465
    %614 = vmatpush1.bf16.msra.mxu0 %v464
    %615 = vmatprep.subr.bf16.mxu0 %v469
    %616 = vmatpush1.bf16.msra.mxu0 %v468
    %617 = vmatprep.subr.bf16.mxu0 %v473
    %618 = vmatpush1.bf16.msra.mxu0 %v472
    %619 = vmatprep.subr.bf16.mxu0 %v477
    %620 = vmatpush1.bf16.msra.mxu0 %v476
    %621 = vmatprep.subr.bf16.mxu0 %v481
    %622 = vmatpush1.bf16.msra.mxu0 %v480
    %623 = vmatprep.subr.bf16.mxu0 %v485
    %624 = vmatpush1.bf16.msra.mxu0 %v484
    %625 = vmatprep.mubr.bf16.mxu0 %v227
    %626 = vmatmul.mubr.bf16.gmra.mrb[0].mxu0 %v226
    %v627 = vpop.f32.mrb[0].mxu0
    %v628 = vadd.f32 %v211, %v627
    %v629 = vpop.f32.mrb[0].mxu0
    %v630 = vadd.f32 %v215, %v629
    %v631 = vpop.f32.mrb[0].mxu0
    %v632 = vadd.f32 %v211, %v631
    %v633 = vpop.f32.mrb[0].mxu0
    %v634 = vadd.f32 %v215, %v633
    %635 = vdwg.mxu0
    %v636 = vmax.f32 %v585, 0.0
    %v637 = vmax.f32 %v587, 0.0
    %v638 = vmax.f32 %v628, 0.0
    %v639 = vmax.f32 %v630, 0.0
    %v640 = vmax.f32 %v589, 0.0
    %v641 = vmax.f32 %v591, 0.0
    %v642 = vmax.f32 %v632, 0.0
    %v643 = vmax.f32 %v634, 0.0
    %v644 = vld [vmem:[#allocation4] sm:$0xff]
    %v645 = vld [vmem:[#allocation4 + $0x8] sm:$0xff]
    %v646 = vld [vmem:[#allocation4 + $0x10] sm:$0xff]
    %v647 = vld [vmem:[#allocation4 + $0x18] sm:$0xff]
    %v648 = vld [vmem:[#allocation4 + $0x20] sm:$0xff]
    %v649 = vld [vmem:[#allocation4 + $0x28] sm:$0xff]
    %v650 = vld [vmem:[#allocation4 + $0x30] sm:$0xff]
    %v651 = vld [vmem:[#allocation4 + $0x38] sm:$0xff]
    %v652 = vld [vmem:[#allocation4 + $0x40] sm:$0xff]
    %v653 = vld [vmem:[#allocation4 + $0x48] sm:$0xff]
    %v654 = vld [vmem:[#allocation4 + $0x50] sm:$0xff]
    %v655 = vld [vmem:[#allocation4 + $0x58] sm:$0xff]
    %v656 = vld [vmem:[#allocation4 + $0x60] sm:$0xff]
    %v657 = vld [vmem:[#allocation4 + $0x68] sm:$0xff]
    %v658 = vld [vmem:[#allocation4 + $0x70] sm:$0xff]
    %v659 = vld [vmem:[#allocation4 + $0x78] sm:$0xff]
    %v660 = vld [vmem:[#allocation4 + $0x80] sm:$0xff]
    %v661 = vld [vmem:[#allocation4 + $0x88] sm:$0xff]
    %v662 = vld [vmem:[#allocation4 + $0x90] sm:$0xff]
    %v663 = vld [vmem:[#allocation4 + $0x98] sm:$0xff]
    %v664 = vld [vmem:[#allocation4 + $0xa0] sm:$0xff]
    %v665 = vld [vmem:[#allocation4 + $0xa8] sm:$0xff]
    %v666 = vld [vmem:[#allocation4 + $0xb0] sm:$0xff]
    %v667 = vld [vmem:[#allocation4 + $0xb8] sm:$0xff]
    %v668 = vld [vmem:[#allocation4 + $0xc0] sm:$0xff]
    %v669 = vld [vmem:[#allocation4 + $0xc8] sm:$0xff]
    %v670 = vld [vmem:[#allocation4 + $0xd0] sm:$0xff]
    %v671 = vld [vmem:[#allocation4 + $0xd8] sm:$0xff]
    %v672 = vld [vmem:[#allocation4 + $0xe0] sm:$0xff]
    %v673 = vld [vmem:[#allocation4 + $0xe8] sm:$0xff]
    %v674 = vld [vmem:[#allocation4 + $0xf0] sm:$0xff]
    %v675 = vld [vmem:[#allocation4 + $0xf8] sm:$0xff]
    %v676 = vld [vmem:[#allocation4 + $0x100] sm:$0xff]
    %v677 = vld [vmem:[#allocation4 + $0x108] sm:$0xff]
    %v678 = vld [vmem:[#allocation4 + $0x110] sm:$0xff]
    %v679 = vld [vmem:[#allocation4 + $0x118] sm:$0xff]
    %v680 = vld [vmem:[#allocation4 + $0x120] sm:$0xff]
    %v681 = vld [vmem:[#allocation4 + $0x128] sm:$0xff]
    %v682 = vld [vmem:[#allocation4 + $0x130] sm:$0xff]
    %v683 = vld [vmem:[#allocation4 + $0x138] sm:$0xff]
    %v684 = vld [vmem:[#allocation4 + $0x140] sm:$0xff]
    %v685 = vld [vmem:[#allocation4 + $0x148] sm:$0xff]
    %v686 = vld [vmem:[#allocation4 + $0x150] sm:$0xff]
    %v687 = vld [vmem:[#allocation4 + $0x158] sm:$0xff]
    %v688 = vld [vmem:[#allocation4 + $0x160] sm:$0xff]
    %v689 = vld [vmem:[#allocation4 + $0x168] sm:$0xff]
    %v690 = vld [vmem:[#allocation4 + $0x170] sm:$0xff]
    %v691 = vld [vmem:[#allocation4 + $0x178] sm:$0xff]
    %v692 = vld [vmem:[#allocation4 + $0x180] sm:$0xff]
    %v693 = vld [vmem:[#allocation4 + $0x188] sm:$0xff]
    %v694 = vld [vmem:[#allocation4 + $0x190] sm:$0xff]
    %v695 = vld [vmem:[#allocation4 + $0x198] sm:$0xff]
    %v696 = vld [vmem:[#allocation4 + $0x1a0] sm:$0xff]
    %v697 = vld [vmem:[#allocation4 + $0x1a8] sm:$0xff]
    %v698 = vld [vmem:[#allocation4 + $0x1b0] sm:$0xff]
    %v699 = vld [vmem:[#allocation4 + $0x1b8] sm:$0xff]
    %v700 = vld [vmem:[#allocation4 + $0x1c0] sm:$0xff]
    %v701 = vld [vmem:[#allocation4 + $0x1c8] sm:$0xff]
    %v702 = vld [vmem:[#allocation4 + $0x1d0] sm:$0xff]
    %v703 = vld [vmem:[#allocation4 + $0x1d8] sm:$0xff]
    %v704 = vld [vmem:[#allocation4 + $0x1e0] sm:$0xff]
    %v705 = vld [vmem:[#allocation4 + $0x1e8] sm:$0xff]
    %v706 = vld [vmem:[#allocation4 + $0x1f0] sm:$0xff]
    %v707 = vld [vmem:[#allocation4 + $0x1f8] sm:$0xff]
    %v708 = vpack.c.bf16 %v640, %v636
    %v709 = vpack.c.bf16 %v641, %v637
    %v710 = vpack.c.bf16 %v642, %v638
    %v711 = vpack.c.bf16 %v643, %v639
    %v712 = vld [vmem:[%s5] sm:$0x3]
    %v714 = vlaneseq
    %v715 = vshrl.u32 %v714, 7
    %v716 = vsub.s32 0, %v715
    %v717 = vrot.slane %v712, %v716
    %v718 = vlaneseq
    %v719 = vshrl.u32 %v718, 7
    %v720 = vsub.s32 1, %v719
    %v721 = vrot.slane %v712, %v720
    %v788 = vunpack.c.l.b16 %v644
    %v789 = vunpack.c.h.b16 %v644
    %v790 = vunpack.c.l.b16 %v645
    %v791 = vunpack.c.h.b16 %v645
    %v792 = vunpack.c.l.b16 %v646
    %v793 = vunpack.c.h.b16 %v646
    %v794 = vunpack.c.l.b16 %v647
    %v795 = vunpack.c.h.b16 %v647
    %v796 = vunpack.c.l.b16 %v648
    %v797 = vunpack.c.h.b16 %v648
    %v798 = vunpack.c.l.b16 %v649
    %v799 = vunpack.c.h.b16 %v649
    %v800 = vunpack.c.l.b16 %v650
    %v801 = vunpack.c.h.b16 %v650
    %v802 = vunpack.c.l.b16 %v651
    %v803 = vunpack.c.h.b16 %v651
    %v804 = vunpack.c.l.b16 %v652
    %v805 = vunpack.c.h.b16 %v652
    %v806 = vunpack.c.l.b16 %v653
    %v807 = vunpack.c.h.b16 %v653
    %v808 = vunpack.c.l.b16 %v654
    %v809 = vunpack.c.h.b16 %v654
    %v810 = vunpack.c.l.b16 %v655
    %v811 = vunpack.c.h.b16 %v655
    %v812 = vunpack.c.l.b16 %v656
    %v813 = vunpack.c.h.b16 %v656
    %v814 = vunpack.c.l.b16 %v657
    %v815 = vunpack.c.h.b16 %v657
    %v816 = vunpack.c.l.b16 %v658
    %v817 = vunpack.c.h.b16 %v658
    %v818 = vunpack.c.l.b16 %v659
    %v819 = vunpack.c.h.b16 %v659
    %v820 = vunpack.c.l.b16 %v660
    %v821 = vunpack.c.h.b16 %v660
    %v822 = vunpack.c.l.b16 %v661
    %v823 = vunpack.c.h.b16 %v661
    %v824 = vunpack.c.l.b16 %v662
    %v825 = vunpack.c.h.b16 %v662
    %v826 = vunpack.c.l.b16 %v663
    %v827 = vunpack.c.h.b16 %v663
    %v828 = vunpack.c.l.b16 %v664
    %v829 = vunpack.c.h.b16 %v664
    %v830 = vunpack.c.l.b16 %v665
    %v831 = vunpack.c.h.b16 %v665
    %v832 = vunpack.c.l.b16 %v666
    %v833 = vunpack.c.h.b16 %v666
    %v834 = vunpack.c.l.b16 %v667
    %v835 = vunpack.c.h.b16 %v667
    %v836 = vunpack.c.l.b16 %v668
    %v837 = vunpack.c.h.b16 %v668
    %v838 = vunpack.c.l.b16 %v669
    %v839 = vunpack.c.h.b16 %v669
    %v840 = vunpack.c.l.b16 %v670
    %v841 = vunpack.c.h.b16 %v670
    %v842 = vunpack.c.l.b16 %v671
    %v843 = vunpack.c.h.b16 %v671
    %v844 = vunpack.c.l.b16 %v672
    %v845 = vunpack.c.h.b16 %v672
    %v846 = vunpack.c.l.b16 %v673
    %v847 = vunpack.c.h.b16 %v673
    %v848 = vunpack.c.l.b16 %v674
    %v849 = vunpack.c.h.b16 %v674
    %v850 = vunpack.c.l.b16 %v675
    %v851 = vunpack.c.h.b16 %v675
    %v852 = vunpack.c.l.b16 %v676
    %v853 = vunpack.c.h.b16 %v676
    %v854 = vunpack.c.l.b16 %v677
    %v855 = vunpack.c.h.b16 %v677
    %v856 = vunpack.c.l.b16 %v678
    %v857 = vunpack.c.h.b16 %v678
    %v858 = vunpack.c.l.b16 %v679
    %v859 = vunpack.c.h.b16 %v679
    %v860 = vunpack.c.l.b16 %v680
    %v861 = vunpack.c.h.b16 %v680
    %v862 = vunpack.c.l.b16 %v681
    %v863 = vunpack.c.h.b16 %v681
    %v864 = vunpack.c.l.b16 %v682
    %v865 = vunpack.c.h.b16 %v682
    %v866 = vunpack.c.l.b16 %v683
    %v867 = vunpack.c.h.b16 %v683
    %v868 = vunpack.c.l.b16 %v684
    %v869 = vunpack.c.h.b16 %v684
    %v870 = vunpack.c.l.b16 %v685
    %v871 = vunpack.c.h.b16 %v685
    %v872 = vunpack.c.l.b16 %v686
    %v873 = vunpack.c.h.b16 %v686
    %v874 = vunpack.c.l.b16 %v687
    %v875 = vunpack.c.h.b16 %v687
    %v876 = vunpack.c.l.b16 %v688
    %v877 = vunpack.c.h.b16 %v688
    %v878 = vunpack.c.l.b16 %v689
    %v879 = vunpack.c.h.b16 %v689
    %v880 = vunpack.c.l.b16 %v690
    %v881 = vunpack.c.h.b16 %v690
    %v882 = vunpack.c.l.b16 %v691
    %v883 = vunpack.c.h.b16 %v691
    %v884 = vunpack.c.l.b16 %v692
    %v885 = vunpack.c.h.b16 %v692
    %v886 = vunpack.c.l.b16 %v693
    %v887 = vunpack.c.h.b16 %v693
    %v888 = vunpack.c.l.b16 %v694
    %v889 = vunpack.c.h.b16 %v694
    %v890 = vunpack.c.l.b16 %v695
    %v891 = vunpack.c.h.b16 %v695
    %v892 = vunpack.c.l.b16 %v696
    %v893 = vunpack.c.h.b16 %v696
    %v894 = vunpack.c.l.b16 %v697
    %v895 = vunpack.c.h.b16 %v697
    %v896 = vunpack.c.l.b16 %v698
    %v897 = vunpack.c.h.b16 %v698
    %v898 = vunpack.c.l.b16 %v699
    %v899 = vunpack.c.h.b16 %v699
    %v900 = vunpack.c.l.b16 %v700
    %v901 = vunpack.c.h.b16 %v700
    %v902 = vunpack.c.l.b16 %v701
    %v903 = vunpack.c.h.b16 %v701
    %v904 = vunpack.c.l.b16 %v702
    %v905 = vunpack.c.h.b16 %v702
    %v906 = vunpack.c.l.b16 %v703
    %v907 = vunpack.c.h.b16 %v703
    %v908 = vunpack.c.l.b16 %v704
    %v909 = vunpack.c.h.b16 %v704
    %v910 = vunpack.c.l.b16 %v705
    %v911 = vunpack.c.h.b16 %v705
    %v912 = vunpack.c.l.b16 %v706
    %v913 = vunpack.c.h.b16 %v706
    %v914 = vunpack.c.l.b16 %v707
    %v915 = vunpack.c.h.b16 %v707
    %v916 = vpack.c.b16 %v790, %v788
    %v917 = vpack.c.b16 %v791, %v789
    %v918 = vpack.c.b16 %v794, %v792
    %v919 = vpack.c.b16 %v795, %v793
    %v920 = vpack.c.b16 %v798, %v796
    %v921 = vpack.c.b16 %v799, %v797
    %v922 = vpack.c.b16 %v802, %v800
    %v923 = vpack.c.b16 %v803, %v801
    %v924 = vpack.c.b16 %v806, %v804
    %v925 = vpack.c.b16 %v807, %v805
    %v926 = vpack.c.b16 %v810, %v808
    %v927 = vpack.c.b16 %v811, %v809
    %v928 = vpack.c.b16 %v814, %v812
    %v929 = vpack.c.b16 %v815, %v813
    %v930 = vpack.c.b16 %v818, %v816
    %v931 = vpack.c.b16 %v819, %v817
    %v932 = vpack.c.b16 %v822, %v820
    %v933 = vpack.c.b16 %v823, %v821
    %v934 = vpack.c.b16 %v826, %v824
    %v935 = vpack.c.b16 %v827, %v825
    %v936 = vpack.c.b16 %v830, %v828
    %v937 = vpack.c.b16 %v831, %v829
    %v938 = vpack.c.b16 %v834, %v832
    %v939 = vpack.c.b16 %v835, %v833
    %v940 = vpack.c.b16 %v838, %v836
    %v941 = vpack.c.b16 %v839, %v837
    %v942 = vpack.c.b16 %v842, %v840
    %v943 = vpack.c.b16 %v843, %v841
    %v944 = vpack.c.b16 %v846, %v844
    %v945 = vpack.c.b16 %v847, %v845
    %v946 = vpack.c.b16 %v850, %v848
    %v947 = vpack.c.b16 %v851, %v849
    %v948 = vpack.c.b16 %v854, %v852
    %v949 = vpack.c.b16 %v855, %v853
    %v950 = vpack.c.b16 %v858, %v856
    %v951 = vpack.c.b16 %v859, %v857
    %v952 = vpack.c.b16 %v862, %v860
    %v953 = vpack.c.b16 %v863, %v861
    %v954 = vpack.c.b16 %v866, %v864
    %v955 = vpack.c.b16 %v867, %v865
    %v956 = vpack.c.b16 %v870, %v868
    %v957 = vpack.c.b16 %v871, %v869
    %v958 = vpack.c.b16 %v874, %v872
    %v959 = vpack.c.b16 %v875, %v873
    %v960 = vpack.c.b16 %v878, %v876
    %v961 = vpack.c.b16 %v879, %v877
    %v962 = vpack.c.b16 %v882, %v880
    %v963 = vpack.c.b16 %v883, %v881
    %v964 = vpack.c.b16 %v886, %v884
    %v965 = vpack.c.b16 %v887, %v885
    %v966 = vpack.c.b16 %v890, %v888
    %v967 = vpack.c.b16 %v891, %v889
    %v968 = vpack.c.b16 %v894, %v892
    %v969 = vpack.c.b16 %v895, %v893
    %v970 = vpack.c.b16 %v898, %v896
    %v971 = vpack.c.b16 %v899, %v897
    %v972 = vpack.c.b16 %v902, %v900
    %v973 = vpack.c.b16 %v903, %v901
    %v974 = vpack.c.b16 %v906, %v904
    %v975 = vpack.c.b16 %v907, %v905
    %v976 = vpack.c.b16 %v910, %v908
    %v977 = vpack.c.b16 %v911, %v909
    %v978 = vpack.c.b16 %v914, %v912
    %v979 = vpack.c.b16 %v915, %v913
    %1044 = vmatprep.subr.bf16.mxu0 %v917
    %1045 = vmatpush1.bf16.msra.mxu0 %v916
    %1046 = vmatprep.subr.bf16.mxu0 %v919
    %1047 = vmatpush1.bf16.msra.mxu0 %v918
    %1048 = vmatprep.subr.bf16.mxu0 %v921
    %1049 = vmatpush1.bf16.msra.mxu0 %v920
    %1050 = vmatprep.subr.bf16.mxu0 %v923
    %1051 = vmatpush1.bf16.msra.mxu0 %v922
    %1052 = vmatprep.subr.bf16.mxu0 %v925
    %1053 = vmatpush1.bf16.msra.mxu0 %v924
    %1054 = vmatprep.subr.bf16.mxu0 %v927
    %1055 = vmatpush1.bf16.msra.mxu0 %v926
    %1056 = vmatprep.subr.bf16.mxu0 %v929
    %1057 = vmatpush1.bf16.msra.mxu0 %v928
    %1058 = vmatprep.subr.bf16.mxu0 %v931
    %1059 = vmatpush1.bf16.msra.mxu0 %v930
    %1060 = vmatprep.subr.bf16.mxu0 %v933
    %1061 = vmatpush1.bf16.msra.mxu0 %v932
    %1062 = vmatprep.subr.bf16.mxu0 %v935
    %1063 = vmatpush1.bf16.msra.mxu0 %v934
    %1064 = vmatprep.subr.bf16.mxu0 %v937
    %1065 = vmatpush1.bf16.msra.mxu0 %v936
    %1066 = vmatprep.subr.bf16.mxu0 %v939
    %1067 = vmatpush1.bf16.msra.mxu0 %v938
    %1068 = vmatprep.subr.bf16.mxu0 %v941
    %1069 = vmatpush1.bf16.msra.mxu0 %v940
    %1070 = vmatprep.subr.bf16.mxu0 %v943
    %1071 = vmatpush1.bf16.msra.mxu0 %v942
    %1072 = vmatprep.subr.bf16.mxu0 %v945
    %1073 = vmatpush1.bf16.msra.mxu0 %v944
    %1074 = vmatprep.subr.bf16.mxu0 %v947
    %1075 = vmatpush1.bf16.msra.mxu0 %v946
    %1076 = vmatprep.mubr.bf16.mxu0 %v709
    %1077 = vmatmul.mubr.bf16.gmra.mrb[0].mxu0 %v708
    %v1078 = vpop.f32.mrb[0].mxu0
    %v1079 = vadd.f32 %v717, %v1078
    %v1080 = vpop.f32.mrb[0].mxu0
    %v1081 = vadd.f32 %v721, %v1080
    %v1082 = vpop.f32.mrb[0].mxu0
    %v1083 = vadd.f32 %v717, %v1082
    %v1084 = vpop.f32.mrb[0].mxu0
    %v1085 = vadd.f32 %v721, %v1084
    %1086 = vdwg.mxu0
    %1087 = vmatprep.subr.bf16.mxu0 %v949
    %1088 = vmatpush1.bf16.msra.mxu0 %v948
    %1089 = vmatprep.subr.bf16.mxu0 %v951
    %1090 = vmatpush1.bf16.msra.mxu0 %v950
    %1091 = vmatprep.subr.bf16.mxu0 %v953
    %1092 = vmatpush1.bf16.msra.mxu0 %v952
    %1093 = vmatprep.subr.bf16.mxu0 %v955
    %1094 = vmatpush1.bf16.msra.mxu0 %v954
    %1095 = vmatprep.subr.bf16.mxu0 %v957
    %1096 = vmatpush1.bf16.msra.mxu0 %v956
    %1097 = vmatprep.subr.bf16.mxu0 %v959
    %1098 = vmatpush1.bf16.msra.mxu0 %v958
    %1099 = vmatprep.subr.bf16.mxu0 %v961
    %1100 = vmatpush1.bf16.msra.mxu0 %v960
    %1101 = vmatprep.subr.bf16.mxu0 %v963
    %1102 = vmatpush1.bf16.msra.mxu0 %v962
    %1103 = vmatprep.subr.bf16.mxu0 %v965
    %1104 = vmatpush1.bf16.msra.mxu0 %v964
    %1105 = vmatprep.subr.bf16.mxu0 %v967
    %1106 = vmatpush1.bf16.msra.mxu0 %v966
    %1107 = vmatprep.subr.bf16.mxu0 %v969
    %1108 = vmatpush1.bf16.msra.mxu0 %v968
    %1109 = vmatprep.subr.bf16.mxu0 %v971
    %1110 = vmatpush1.bf16.msra.mxu0 %v970
    %1111 = vmatprep.subr.bf16.mxu0 %v973
    %1112 = vmatpush1.bf16.msra.mxu0 %v972
    %1113 = vmatprep.subr.bf16.mxu0 %v975
    %1114 = vmatpush1.bf16.msra.mxu0 %v974
    %1115 = vmatprep.subr.bf16.mxu0 %v977
    %1116 = vmatpush1.bf16.msra.mxu0 %v976
    %1117 = vmatprep.subr.bf16.mxu0 %v979
    %1118 = vmatpush1.bf16.msra.mxu0 %v978
    %1119 = vmatprep.mubr.bf16.mxu0 %v711
    %1120 = vmatmul.mubr.bf16.gmra.mrb[0].mxu0 %v710
    %v1121 = vpop.f32.mrb[0].mxu0
    %v1122 = vadd.f32 %v1079, %v1121
    %v1123 = vpop.f32.mrb[0].mxu0
    %v1124 = vadd.f32 %v1081, %v1123
    %v1125 = vpop.f32.mrb[0].mxu0
    %v1126 = vadd.f32 %v1083, %v1125
    %v1127 = vpop.f32.mrb[0].mxu0
    %v1128 = vadd.f32 %v1085, %v1127
    %1129 = vdwg.mxu0
    %v1130 = vmax.f32 %v1122, 0.0
    %v1131 = vmax.f32 %v1124, 0.0
    %v1132 = vmax.f32 %v1126, 0.0
    %v1133 = vmax.f32 %v1128, 0.0
    %v1134 = vld [vmem:[#allocation6] sm:$0xff]
    %v1135 = vld [vmem:[#allocation6 + $0x8] sm:$0xff]
    %v1136 = vld [vmem:[#allocation6 + $0x10] sm:$0xff]
    %v1137 = vld [vmem:[#allocation6 + $0x18] sm:$0xff]
    %v1138 = vld [vmem:[#allocation6 + $0x20] sm:$0xff]
    %v1139 = vld [vmem:[#allocation6 + $0x28] sm:$0xff]
    %v1140 = vld [vmem:[#allocation6 + $0x30] sm:$0xff]
    %v1141 = vld [vmem:[#allocation6 + $0x38] sm:$0xff]
    %v1142 = vld [vmem:[#allocation6 + $0x40] sm:$0xff]
    %v1143 = vld [vmem:[#allocation6 + $0x48] sm:$0xff]
    %v1144 = vld [vmem:[#allocation6 + $0x50] sm:$0xff]
    %v1145 = vld [vmem:[#allocation6 + $0x58] sm:$0xff]
    %v1146 = vld [vmem:[#allocation6 + $0x60] sm:$0xff]
    %v1147 = vld [vmem:[#allocation6 + $0x68] sm:$0xff]
    %v1148 = vld [vmem:[#allocation6 + $0x70] sm:$0xff]
    %v1149 = vld [vmem:[#allocation6 + $0x78] sm:$0xff]
    %v1150 = vld [vmem:[#allocation6 + $0x80] sm:$0xff]
    %v1151 = vld [vmem:[#allocation6 + $0x88] sm:$0xff]
    %v1152 = vld [vmem:[#allocation6 + $0x90] sm:$0xff]
    %v1153 = vld [vmem:[#allocation6 + $0x98] sm:$0xff]
    %v1154 = vld [vmem:[#allocation6 + $0xa0] sm:$0xff]
    %v1155 = vld [vmem:[#allocation6 + $0xa8] sm:$0xff]
    %v1156 = vld [vmem:[#allocation6 + $0xb0] sm:$0xff]
    %v1157 = vld [vmem:[#allocation6 + $0xb8] sm:$0xff]
    %v1158 = vld [vmem:[#allocation6 + $0xc0] sm:$0xff]
    %v1159 = vld [vmem:[#allocation6 + $0xc8] sm:$0xff]
    %v1160 = vld [vmem:[#allocation6 + $0xd0] sm:$0xff]
    %v1161 = vld [vmem:[#allocation6 + $0xd8] sm:$0xff]
    %v1162 = vld [vmem:[#allocation6 + $0xe0] sm:$0xff]
    %v1163 = vld [vmem:[#allocation6 + $0xe8] sm:$0xff]
    %v1164 = vld [vmem:[#allocation6 + $0xf0] sm:$0xff]
    %v1165 = vld [vmem:[#allocation6 + $0xf8] sm:$0xff]
    %v1166 = vpack.c.bf16 %v1132, %v1130
    %v1167 = vpack.c.bf16 %v1133, %v1131
    %v1168 = vld [vmem:[%s7] sm:$0x3]
    %v1170 = vlaneseq
    %v1171 = vshrl.u32 %v1170, 7
    %v1172 = vsub.s32 0, %v1171
    %v1173 = vrot.slane %v1168, %v1172
    %v1174 = vlaneseq
    %v1175 = vshrl.u32 %v1174, 7
    %v1176 = vsub.s32 1, %v1175
    %v1177 = vrot.slane %v1168, %v1176
    %v1212 = vunpack.c.l.b16 %v1134
    %v1213 = vunpack.c.h.b16 %v1134
    %v1214 = vunpack.c.l.b16 %v1135
    %v1215 = vunpack.c.h.b16 %v1135
    %v1216 = vunpack.c.l.b16 %v1136
    %v1217 = vunpack.c.h.b16 %v1136
    %v1218 = vunpack.c.l.b16 %v1137
    %v1219 = vunpack.c.h.b16 %v1137
    %v1220 = vunpack.c.l.b16 %v1138
    %v1221 = vunpack.c.h.b16 %v1138
    %v1222 = vunpack.c.l.b16 %v1139
    %v1223 = vunpack.c.h.b16 %v1139
    %v1224 = vunpack.c.l.b16 %v1140
    %v1225 = vunpack.c.h.b16 %v1140
    %v1226 = vunpack.c.l.b16 %v1141
    %v1227 = vunpack.c.h.b16 %v1141
    %v1228 = vunpack.c.l.b16 %v1142
    %v1229 = vunpack.c.h.b16 %v1142
    %v1230 = vunpack.c.l.b16 %v1143
    %v1231 = vunpack.c.h.b16 %v1143
    %v1232 = vunpack.c.l.b16 %v1144
    %v1233 = vunpack.c.h.b16 %v1144
    %v1234 = vunpack.c.l.b16 %v1145
    %v1235 = vunpack.c.h.b16 %v1145
    %v1236 = vunpack.c.l.b16 %v1146
    %v1237 = vunpack.c.h.b16 %v1146
    %v1238 = vunpack.c.l.b16 %v1147
    %v1239 = vunpack.c.h.b16 %v1147
    %v1240 = vunpack.c.l.b16 %v1148
    %v1241 = vunpack.c.h.b16 %v1148
    %v1242 = vunpack.c.l.b16 %v1149
    %v1243 = vunpack.c.h.b16 %v1149
    %v1244 = vunpack.c.l.b16 %v1150
    %v1245 = vunpack.c.h.b16 %v1150
    %v1246 = vunpack.c.l.b16 %v1151
    %v1247 = vunpack.c.h.b16 %v1151
    %v1248 = vunpack.c.l.b16 %v1152
    %v1249 = vunpack.c.h.b16 %v1152
    %v1250 = vunpack.c.l.b16 %v1153
    %v1251 = vunpack.c.h.b16 %v1153
    %v1252 = vunpack.c.l.b16 %v1154
    %v1253 = vunpack.c.h.b16 %v1154
    %v1254 = vunpack.c.l.b16 %v1155
    %v1255 = vunpack.c.h.b16 %v1155
    %v1256 = vunpack.c.l.b16 %v1156
    %v1257 = vunpack.c.h.b16 %v1156
    %v1258 = vunpack.c.l.b16 %v1157
    %v1259 = vunpack.c.h.b16 %v1157
    %v1260 = vunpack.c.l.b16 %v1158
    %v1261 = vunpack.c.h.b16 %v1158
    %v1262 = vunpack.c.l.b16 %v1159
    %v1263 = vunpack.c.h.b16 %v1159
    %v1264 = vunpack.c.l.b16 %v1160
    %v1265 = vunpack.c.h.b16 %v1160
    %v1266 = vunpack.c.l.b16 %v1161
    %v1267 = vunpack.c.h.b16 %v1161
    %v1268 = vunpack.c.l.b16 %v1162
    %v1269 = vunpack.c.h.b16 %v1162
    %v1270 = vunpack.c.l.b16 %v1163
    %v1271 = vunpack.c.h.b16 %v1163
    %v1272 = vunpack.c.l.b16 %v1164
    %v1273 = vunpack.c.h.b16 %v1164
    %v1274 = vunpack.c.l.b16 %v1165
    %v1275 = vunpack.c.h.b16 %v1165
    %v1276 = vpack.c.b16 %v1214, %v1212
    %v1277 = vpack.c.b16 %v1215, %v1213
    %v1278 = vpack.c.b16 %v1218, %v1216
    %v1279 = vpack.c.b16 %v1219, %v1217
    %v1280 = vpack.c.b16 %v1222, %v1220
    %v1281 = vpack.c.b16 %v1223, %v1221
    %v1282 = vpack.c.b16 %v1226, %v1224
    %v1283 = vpack.c.b16 %v1227, %v1225
    %v1284 = vpack.c.b16 %v1230, %v1228
    %v1285 = vpack.c.b16 %v1231, %v1229
    %v1286 = vpack.c.b16 %v1234, %v1232
    %v1287 = vpack.c.b16 %v1235, %v1233
    %v1288 = vpack.c.b16 %v1238, %v1236
    %v1289 = vpack.c.b16 %v1239, %v1237
    %v1290 = vpack.c.b16 %v1242, %v1240
    %v1291 = vpack.c.b16 %v1243, %v1241
    %v1292 = vpack.c.b16 %v1246, %v1244
    %v1293 = vpack.c.b16 %v1247, %v1245
    %v1294 = vpack.c.b16 %v1250, %v1248
    %v1295 = vpack.c.b16 %v1251, %v1249
    %v1296 = vpack.c.b16 %v1254, %v1252
    %v1297 = vpack.c.b16 %v1255, %v1253
    %v1298 = vpack.c.b16 %v1258, %v1256
    %v1299 = vpack.c.b16 %v1259, %v1257
    %v1300 = vpack.c.b16 %v1262, %v1260
    %v1301 = vpack.c.b16 %v1263, %v1261
    %v1302 = vpack.c.b16 %v1266, %v1264
    %v1303 = vpack.c.b16 %v1267, %v1265
    %v1304 = vpack.c.b16 %v1270, %v1268
    %v1305 = vpack.c.b16 %v1271, %v1269
    %v1306 = vpack.c.b16 %v1274, %v1272
    %v1307 = vpack.c.b16 %v1275, %v1273
    %1340 = vmatprep.subr.bf16.mxu0 %v1277
    %1341 = vmatpush1.bf16.msra.mxu0 %v1276
    %1342 = vmatprep.subr.bf16.mxu0 %v1279
    %1343 = vmatpush1.bf16.msra.mxu0 %v1278
    %1344 = vmatprep.subr.bf16.mxu0 %v1281
    %1345 = vmatpush1.bf16.msra.mxu0 %v1280
    %1346 = vmatprep.subr.bf16.mxu0 %v1283
    %1347 = vmatpush1.bf16.msra.mxu0 %v1282
    %1348 = vmatprep.subr.bf16.mxu0 %v1285
    %1349 = vmatpush1.bf16.msra.mxu0 %v1284
    %1350 = vmatprep.subr.bf16.mxu0 %v1287
    %1351 = vmatpush1.bf16.msra.mxu0 %v1286
    %1352 = vmatprep.subr.bf16.mxu0 %v1289
    %1353 = vmatpush1.bf16.msra.mxu0 %v1288
    %1354 = vmatprep.subr.bf16.mxu0 %v1291
    %1355 = vmatpush1.bf16.msra.mxu0 %v1290
    %1356 = vmatprep.subr.bf16.mxu0 %v1293
    %1357 = vmatpush1.bf16.msra.mxu0 %v1292
    %1358 = vmatprep.subr.bf16.mxu0 %v1295
    %1359 = vmatpush1.bf16.msra.mxu0 %v1294
    %1360 = vmatprep.subr.bf16.mxu0 %v1297
    %1361 = vmatpush1.bf16.msra.mxu0 %v1296
    %1362 = vmatprep.subr.bf16.mxu0 %v1299
    %1363 = vmatpush1.bf16.msra.mxu0 %v1298
    %1364 = vmatprep.subr.bf16.mxu0 %v1301
    %1365 = vmatpush1.bf16.msra.mxu0 %v1300
    %1366 = vmatprep.subr.bf16.mxu0 %v1303
    %1367 = vmatpush1.bf16.msra.mxu0 %v1302
    %1368 = vmatprep.subr.bf16.mxu0 %v1305
    %1369 = vmatpush1.bf16.msra.mxu0 %v1304
    %1370 = vmatprep.subr.bf16.mxu0 %v1307
    %1371 = vmatpush1.bf16.msra.mxu0 %v1306
    %1372 = vmatprep.mubr.bf16.mxu0 %v1167
    %1373 = vmatmul.mubr.bf16.gmra.mrb[0].mxu0 %v1166
    %v1374 = vpop.f32.mrb[0].mxu0
    %v1375 = vadd.f32 %v1173, %v1374
    %v1376 = vpop.f32.mrb[0].mxu0
    %v1377 = vadd.f32 %v1177, %v1376
    %v1378 = vpop.f32.mrb[0].mxu0
    %v1379 = vadd.f32 %v1173, %v1378
    %v1380 = vpop.f32.mrb[0].mxu0
    %v1381 = vadd.f32 %v1177, %v1380
    %1382 = vdwg.mxu0
    %v1383 = vmul.f32 %v1377, 0.5
    %v1384 = vmul.f32 %v1381, 0.5
    %v1385 = vmul.f32 %v1383, 1.442695
    %v1386 = vpow.pop %v1385
    %v1387 = vmul.f32 %v1384, 1.442695
    %v1388 = vpow.pop %v1387
    %v1389 = vld [vmem:[%s1] sm:$0xff]
    %v1390 = vld [vmem:[%s1 + $0x8] sm:$0xff]
    %v1391 = vmul.f32 %v1389, %v1386
    %v1392 = vmul.f32 %v1390, %v1388
    %v1393 = vadd.f32 %v1375, %v1391
    %v1394 = vadd.f32 %v1379, %v1392
    %v1395 = vld [vmem:[#allocation7] sm:$0xff]
    %v1396 = vld [vmem:[#allocation7 + $0x8] sm:$0xff]
    %v1397 = vld [vmem:[#allocation7 + $0x10] sm:$0xff]
    %v1398 = vld [vmem:[#allocation7 + $0x18] sm:$0xff]
    %v1399 = vld [vmem:[#allocation7 + $0x20] sm:$0xff]
    %v1400 = vld [vmem:[#allocation7 + $0x28] sm:$0xff]
    %v1401 = vld [vmem:[#allocation7 + $0x30] sm:$0xff]
    %v1402 = vld [vmem:[#allocation7 + $0x38] sm:$0xff]
    %v1403 = vld [vmem:[#allocation7 + $0x40] sm:$0xff]
    %v1404 = vld [vmem:[#allocation7 + $0x48] sm:$0xff]
    %v1405 = vld [vmem:[#allocation7 + $0x50] sm:$0xff]
    %v1406 = vld [vmem:[#allocation7 + $0x58] sm:$0xff]
    %v1407 = vld [vmem:[#allocation7 + $0x60] sm:$0xff]
    %v1408 = vld [vmem:[#allocation7 + $0x68] sm:$0xff]
    %v1409 = vld [vmem:[#allocation7 + $0x70] sm:$0xff]
    %v1410 = vld [vmem:[#allocation7 + $0x78] sm:$0xff]
    %v1411 = vpack.c.bf16 %v1394, %v1393
    %v1412 = vld [vmem:[%s9] sm:$0x3]
    %v1414 = vlaneseq
    %v1415 = vshrl.u32 %v1414, 7
    %v1416 = vsub.s32 0, %v1415
    %v1417 = vrot.slane %v1412, %v1416
    %v1418 = vlaneseq
    %v1419 = vshrl.u32 %v1418, 7
    %v1420 = vsub.s32 1, %v1419
    %v1421 = vrot.slane %v1412, %v1420
    %v1440 = vunpack.c.l.b16 %v1395
    %v1441 = vunpack.c.h.b16 %v1395
    %v1442 = vunpack.c.l.b16 %v1396
    %v1443 = vunpack.c.h.b16 %v1396
    %v1444 = vunpack.c.l.b16 %v1397
    %v1445 = vunpack.c.h.b16 %v1397
    %v1446 = vunpack.c.l.b16 %v1398
    %v1447 = vunpack.c.h.b16 %v1398
    %v1448 = vunpack.c.l.b16 %v1399
    %v1449 = vunpack.c.h.b16 %v1399
    %v1450 = vunpack.c.l.b16 %v1400
    %v1451 = vunpack.c.h.b16 %v1400
    %v1452 = vunpack.c.l.b16 %v1401
    %v1453 = vunpack.c.h.b16 %v1401
    %v1454 = vunpack.c.l.b16 %v1402
    %v1455 = vunpack.c.h.b16 %v1402
    %v1456 = vunpack.c.l.b16 %v1403
    %v1457 = vunpack.c.h.b16 %v1403
    %v1458 = vunpack.c.l.b16 %v1404
    %v1459 = vunpack.c.h.b16 %v1404
    %v1460 = vunpack.c.l.b16 %v1405
    %v1461 = vunpack.c.h.b16 %v1405
    %v1462 = vunpack.c.l.b16 %v1406
    %v1463 = vunpack.c.h.b16 %v1406
    %v1464 = vunpack.c.l.b16 %v1407
    %v1465 = vunpack.c.h.b16 %v1407
    %v1466 = vunpack.c.l.b16 %v1408
    %v1467 = vunpack.c.h.b16 %v1408
    %v1468 = vunpack.c.l.b16 %v1409
    %v1469 = vunpack.c.h.b16 %v1409
    %v1470 = vunpack.c.l.b16 %v1410
    %v1471 = vunpack.c.h.b16 %v1410
    %v1472 = vpack.c.b16 %v1442, %v1440
    %v1473 = vpack.c.b16 %v1443, %v1441
    %v1474 = vpack.c.b16 %v1446, %v1444
    %v1475 = vpack.c.b16 %v1447, %v1445
    %v1476 = vpack.c.b16 %v1450, %v1448
    %v1477 = vpack.c.b16 %v1451, %v1449
    %v1478 = vpack.c.b16 %v1454, %v1452
    %v1479 = vpack.c.b16 %v1455, %v1453
    %v1480 = vpack.c.b16 %v1458, %v1456
    %v1481 = vpack.c.b16 %v1459, %v1457
    %v1482 = vpack.c.b16 %v1462, %v1460
    %v1483 = vpack.c.b16 %v1463, %v1461
    %v1484 = vpack.c.b16 %v1466, %v1464
    %v1485 = vpack.c.b16 %v1467, %v1465
    %v1486 = vpack.c.b16 %v1470, %v1468
    %v1487 = vpack.c.b16 %v1471, %v1469
    %1504 = vmatprep.subr.bf16.mxu0 %v1473
    %1505 = vmatpush1.bf16.msra.mxu0 %v1472
    %1506 = vmatprep.subr.bf16.mxu0 %v1475
    %1507 = vmatpush1.bf16.msra.mxu0 %v1474
    %1508 = vmatprep.subr.bf16.mxu0 %v1477
    %1509 = vmatpush1.bf16.msra.mxu0 %v1476
    %1510 = vmatprep.subr.bf16.mxu0 %v1479
    %1511 = vmatpush1.bf16.msra.mxu0 %v1478
    %1512 = vmatprep.subr.bf16.mxu0 %v1481
    %1513 = vmatpush1.bf16.msra.mxu0 %v1480
    %1514 = vmatprep.subr.bf16.mxu0 %v1483
    %1515 = vmatpush1.bf16.msra.mxu0 %v1482
    %1516 = vmatprep.subr.bf16.mxu0 %v1485
    %1517 = vmatpush1.bf16.msra.mxu0 %v1484
    %1518 = vmatprep.subr.bf16.mxu0 %v1487
    %1519 = vmatpush1.bf16.msra.mxu0 %v1486
    %1520 = vmatprep.subr.bf16.mxu0 0
    %1521 = vmatpush1.bf16.msra.mxu0 0
    %1522 = vmatprep.subr.bf16.mxu0 0
    %1523 = vmatpush1.bf16.msra.mxu0 0
    %1524 = vmatprep.subr.bf16.mxu0 0
    %1525 = vmatpush1.bf16.msra.mxu0 0
    %1526 = vmatprep.subr.bf16.mxu0 0
    %1527 = vmatpush1.bf16.msra.mxu0 0
    %1528 = vmatprep.subr.bf16.mxu0 0
    %1529 = vmatpush1.bf16.msra.mxu0 0
    %1530 = vmatprep.subr.bf16.mxu0 0
    %1531 = vmatpush1.bf16.msra.mxu0 0
    %1532 = vmatprep.subr.bf16.mxu0 0
    %1533 = vmatpush1.bf16.msra.mxu0 0
    %1534 = vmatprep.subr.bf16.mxu0 0
    %1535 = vmatpush1.bf16.msra.mxu0 0
    %1536 = vmatprep.mubr.bf16.mxu0 0
    %1537 = vmatmul.mubr.bf16.gmra.mrb[0].mxu0 %v1411
    %v1538 = vpop.f32.mrb[0].mxu0
    %v1539 = vadd.f32 %v1417, %v1538
    %v1540 = vpop.f32.mrb[0].mxu0
    %v1541 = vadd.f32 %v1421, %v1540
    %v1542 = vpop.f32.mrb[0].mxu0
    %v1543 = vadd.f32 %v1417, %v1542
    %v1544 = vpop.f32.mrb[0].mxu0
    %v1545 = vadd.f32 %v1421, %v1544
    %1546 = vdwg.mxu0
    %v1547 = vmax.f32 %v1539, 0.0
    %v1548 = vmax.f32 %v1541, 0.0
    %v1549 = vmax.f32 %v1543, 0.0
    %v1550 = vmax.f32 %v1545, 0.0
    %v1551 = vld [vmem:[#allocation9] sm:$0xff]
    %v1552 = vld [vmem:[#allocation9 + $0x8] sm:$0xff]
    %v1553 = vld [vmem:[#allocation9 + $0x10] sm:$0xff]
    %v1554 = vld [vmem:[#allocation9 + $0x18] sm:$0xff]
    %v1555 = vld [vmem:[#allocation9 + $0x20] sm:$0xff]
    %v1556 = vld [vmem:[#allocation9 + $0x28] sm:$0xff]
    %v1557 = vld [vmem:[#allocation9 + $0x30] sm:$0xff]
    %v1558 = vld [vmem:[#allocation9 + $0x38] sm:$0xff]
    %v1559 = vld [vmem:[#allocation9 + $0x40] sm:$0xff]
    %v1560 = vld [vmem:[#allocation9 + $0x48] sm:$0xff]
    %v1561 = vld [vmem:[#allocation9 + $0x50] sm:$0xff]
    %v1562 = vld [vmem:[#allocation9 + $0x58] sm:$0xff]
    %v1563 = vld [vmem:[#allocation9 + $0x60] sm:$0xff]
    %v1564 = vld [vmem:[#allocation9 + $0x68] sm:$0xff]
    %v1565 = vld [vmem:[#allocation9 + $0x70] sm:$0xff]
    %v1566 = vld [vmem:[#allocation9 + $0x78] sm:$0xff]
    %v1567 = vld [vmem:[#allocation9 + $0x80] sm:$0xff]
    %v1568 = vld [vmem:[#allocation9 + $0x88] sm:$0xff]
    %v1569 = vld [vmem:[#allocation9 + $0x90] sm:$0xff]
    %v1570 = vld [vmem:[#allocation9 + $0x98] sm:$0xff]
    %v1571 = vld [vmem:[#allocation9 + $0xa0] sm:$0xff]
    %v1572 = vld [vmem:[#allocation9 + $0xa8] sm:$0xff]
    %v1573 = vld [vmem:[#allocation9 + $0xb0] sm:$0xff]
    %v1574 = vld [vmem:[#allocation9 + $0xb8] sm:$0xff]
    %v1575 = vld [vmem:[#allocation9 + $0xc0] sm:$0xff]
    %v1576 = vld [vmem:[#allocation9 + $0xc8] sm:$0xff]
    %v1577 = vld [vmem:[#allocation9 + $0xd0] sm:$0xff]
    %v1578 = vld [vmem:[#allocation9 + $0xd8] sm:$0xff]
    %v1579 = vld [vmem:[#allocation9 + $0xe0] sm:$0xff]
    %v1580 = vld [vmem:[#allocation9 + $0xe8] sm:$0xff]
    %v1581 = vld [vmem:[#allocation9 + $0xf0] sm:$0xff]
    %v1582 = vld [vmem:[#allocation9 + $0xf8] sm:$0xff]
    %v1583 = vld [vmem:[#allocation9 + $0x100] sm:$0xff]
    %v1584 = vld [vmem:[#allocation9 + $0x108] sm:$0xff]
    %v1585 = vld [vmem:[#allocation9 + $0x110] sm:$0xff]
    %v1586 = vld [vmem:[#allocation9 + $0x118] sm:$0xff]
    %v1587 = vld [vmem:[#allocation9 + $0x120] sm:$0xff]
    %v1588 = vld [vmem:[#allocation9 + $0x128] sm:$0xff]
    %v1589 = vld [vmem:[#allocation9 + $0x130] sm:$0xff]
    %v1590 = vld [vmem:[#allocation9 + $0x138] sm:$0xff]
    %v1591 = vld [vmem:[#allocation9 + $0x140] sm:$0xff]
    %v1592 = vld [vmem:[#allocation9 + $0x148] sm:$0xff]
    %v1593 = vld [vmem:[#allocation9 + $0x150] sm:$0xff]
    %v1594 = vld [vmem:[#allocation9 + $0x158] sm:$0xff]
    %v1595 = vld [vmem:[#allocation9 + $0x160] sm:$0xff]
    %v1596 = vld [vmem:[#allocation9 + $0x168] sm:$0xff]
    %v1597 = vld [vmem:[#allocation9 + $0x170] sm:$0xff]
    %v1598 = vld [vmem:[#allocation9 + $0x178] sm:$0xff]
    %v1599 = vld [vmem:[#allocation9 + $0x180] sm:$0xff]
    %v1600 = vld [vmem:[#allocation9 + $0x188] sm:$0xff]
    %v1601 = vld [vmem:[#allocation9 + $0x190] sm:$0xff]
    %v1602 = vld [vmem:[#allocation9 + $0x198] sm:$0xff]
    %v1603 = vld [vmem:[#allocation9 + $0x1a0] sm:$0xff]
    %v1604 = vld [vmem:[#allocation9 + $0x1a8] sm:$0xff]
    %v1605 = vld [vmem:[#allocation9 + $0x1b0] sm:$0xff]
    %v1606 = vld [vmem:[#allocation9 + $0x1b8] sm:$0xff]
    %v1607 = vld [vmem:[#allocation9 + $0x1c0] sm:$0xff]
    %v1608 = vld [vmem:[#allocation9 + $0x1c8] sm:$0xff]
    %v1609 = vld [vmem:[#allocation9 + $0x1d0] sm:$0xff]
    %v1610 = vld [vmem:[#allocation9 + $0x1d8] sm:$0xff]
    %v1611 = vld [vmem:[#allocation9 + $0x1e0] sm:$0xff]
    %v1612 = vld [vmem:[#allocation9 + $0x1e8] sm:$0xff]
    %v1613 = vld [vmem:[#allocation9 + $0x1f0] sm:$0xff]
    %v1614 = vld [vmem:[#allocation9 + $0x1f8] sm:$0xff]
    %v1615 = vpack.c.bf16 %v1549, %v1547
    %v1616 = vpack.c.bf16 %v1550, %v1548
    %v1617 = vld [vmem:[%s11] sm:$0xf]
    %v1619 = vlaneseq
    %v1620 = vshrl.u32 %v1619, 7
    %v1621 = vsub.s32 0, %v1620
    %v1622 = vrot.slane %v1617, %v1621
    %v1623 = vlaneseq
    %v1624 = vshrl.u32 %v1623, 7
    %v1625 = vsub.s32 1, %v1624
    %v1626 = vrot.slane %v1617, %v1625
    %v1627 = vlaneseq
    %v1628 = vshrl.u32 %v1627, 7
    %v1629 = vsub.s32 2, %v1628
    %v1630 = vrot.slane %v1617, %v1629
    %v1631 = vlaneseq
    %v1632 = vshrl.u32 %v1631, 7
    %v1633 = vsub.s32 3, %v1632
    %v1634 = vrot.slane %v1617, %v1633
    %v1703 = vunpack.c.l.b16 %v1551
    %v1704 = vunpack.c.h.b16 %v1551
    %v1705 = vunpack.c.l.b16 %v1552
    %v1706 = vunpack.c.h.b16 %v1552
    %v1707 = vunpack.c.l.b16 %v1553
    %v1708 = vunpack.c.h.b16 %v1553
    %v1709 = vunpack.c.l.b16 %v1554
    %v1710 = vunpack.c.h.b16 %v1554
    %v1711 = vunpack.c.l.b16 %v1555
    %v1712 = vunpack.c.h.b16 %v1555
    %v1713 = vunpack.c.l.b16 %v1556
    %v1714 = vunpack.c.h.b16 %v1556
    %v1715 = vunpack.c.l.b16 %v1557
    %v1716 = vunpack.c.h.b16 %v1557
    %v1717 = vunpack.c.l.b16 %v1558
    %v1718 = vunpack.c.h.b16 %v1558
    %v1719 = vunpack.c.l.b16 %v1559
    %v1720 = vunpack.c.h.b16 %v1559
    %v1721 = vunpack.c.l.b16 %v1560
    %v1722 = vunpack.c.h.b16 %v1560
    %v1723 = vunpack.c.l.b16 %v1561
    %v1724 = vunpack.c.h.b16 %v1561
    %v1725 = vunpack.c.l.b16 %v1562
    %v1726 = vunpack.c.h.b16 %v1562
    %v1727 = vunpack.c.l.b16 %v1563
    %v1728 = vunpack.c.h.b16 %v1563
    %v1729 = vunpack.c.l.b16 %v1564
    %v1730 = vunpack.c.h.b16 %v1564
    %v1731 = vunpack.c.l.b16 %v1565
    %v1732 = vunpack.c.h.b16 %v1565
    %v1733 = vunpack.c.l.b16 %v1566
    %v1734 = vunpack.c.h.b16 %v1566
    %v1735 = vunpack.c.l.b16 %v1567
    %v1736 = vunpack.c.h.b16 %v1567
    %v1737 = vunpack.c.l.b16 %v1568
    %v1738 = vunpack.c.h.b16 %v1568
    %v1739 = vunpack.c.l.b16 %v1569
    %v1740 = vunpack.c.h.b16 %v1569
    %v1741 = vunpack.c.l.b16 %v1570
    %v1742 = vunpack.c.h.b16 %v1570
    %v1743 = vunpack.c.l.b16 %v1571
    %v1744 = vunpack.c.h.b16 %v1571
    %v1745 = vunpack.c.l.b16 %v1572
    %v1746 = vunpack.c.h.b16 %v1572
    %v1747 = vunpack.c.l.b16 %v1573
    %v1748 = vunpack.c.h.b16 %v1573
    %v1749 = vunpack.c.l.b16 %v1574
    %v1750 = vunpack.c.h.b16 %v1574
    %v1751 = vunpack.c.l.b16 %v1575
    %v1752 = vunpack.c.h.b16 %v1575
    %v1753 = vunpack.c.l.b16 %v1576
    %v1754 = vunpack.c.h.b16 %v1576
    %v1755 = vunpack.c.l.b16 %v1577
    %v1756 = vunpack.c.h.b16 %v1577
    %v1757 = vunpack.c.l.b16 %v1578
    %v1758 = vunpack.c.h.b16 %v1578
    %v1759 = vunpack.c.l.b16 %v1579
    %v1760 = vunpack.c.h.b16 %v1579
    %v1761 = vunpack.c.l.b16 %v1580
    %v1762 = vunpack.c.h.b16 %v1580
    %v1763 = vunpack.c.l.b16 %v1581
    %v1764 = vunpack.c.h.b16 %v1581
    %v1765 = vunpack.c.l.b16 %v1582
    %v1766 = vunpack.c.h.b16 %v1582
    %v1767 = vunpack.c.l.b16 %v1583
    %v1768 = vunpack.c.h.b16 %v1583
    %v1769 = vunpack.c.l.b16 %v1584
    %v1770 = vunpack.c.h.b16 %v1584
    %v1771 = vunpack.c.l.b16 %v1585
    %v1772 = vunpack.c.h.b16 %v1585
    %v1773 = vunpack.c.l.b16 %v1586
    %v1774 = vunpack.c.h.b16 %v1586
    %v1775 = vunpack.c.l.b16 %v1587
    %v1776 = vunpack.c.h.b16 %v1587
    %v1777 = vunpack.c.l.b16 %v1588
    %v1778 = vunpack.c.h.b16 %v1588
    %v1779 = vunpack.c.l.b16 %v1589
    %v1780 = vunpack.c.h.b16 %v1589
    %v1781 = vunpack.c.l.b16 %v1590
    %v1782 = vunpack.c.h.b16 %v1590
    %v1783 = vunpack.c.l.b16 %v1591
    %v1784 = vunpack.c.h.b16 %v1591
    %v1785 = vunpack.c.l.b16 %v1592
    %v1786 = vunpack.c.h.b16 %v1592
    %v1787 = vunpack.c.l.b16 %v1593
    %v1788 = vunpack.c.h.b16 %v1593
    %v1789 = vunpack.c.l.b16 %v1594
    %v1790 = vunpack.c.h.b16 %v1594
    %v1791 = vunpack.c.l.b16 %v1595
    %v1792 = vunpack.c.h.b16 %v1595
    %v1793 = vunpack.c.l.b16 %v1596
    %v1794 = vunpack.c.h.b16 %v1596
    %v1795 = vunpack.c.l.b16 %v1597
    %v1796 = vunpack.c.h.b16 %v1597
    %v1797 = vunpack.c.l.b16 %v1598
    %v1798 = vunpack.c.h.b16 %v1598
    %v1799 = vunpack.c.l.b16 %v1599
    %v1800 = vunpack.c.h.b16 %v1599
    %v1801 = vunpack.c.l.b16 %v1600
    %v1802 = vunpack.c.h.b16 %v1600
    %v1803 = vunpack.c.l.b16 %v1601
    %v1804 = vunpack.c.h.b16 %v1601
    %v1805 = vunpack.c.l.b16 %v1602
    %v1806 = vunpack.c.h.b16 %v1602
    %v1807 = vunpack.c.l.b16 %v1603
    %v1808 = vunpack.c.h.b16 %v1603
    %v1809 = vunpack.c.l.b16 %v1604
    %v1810 = vunpack.c.h.b16 %v1604
    %v1811 = vunpack.c.l.b16 %v1605
    %v1812 = vunpack.c.h.b16 %v1605
    %v1813 = vunpack.c.l.b16 %v1606
    %v1814 = vunpack.c.h.b16 %v1606
    %v1815 = vunpack.c.l.b16 %v1607
    %v1816 = vunpack.c.h.b16 %v1607
    %v1817 = vunpack.c.l.b16 %v1608
    %v1818 = vunpack.c.h.b16 %v1608
    %v1819 = vunpack.c.l.b16 %v1609
    %v1820 = vunpack.c.h.b16 %v1609
    %v1821 = vunpack.c.l.b16 %v1610
    %v1822 = vunpack.c.h.b16 %v1610
    %v1823 = vunpack.c.l.b16 %v1611
    %v1824 = vunpack.c.h.b16 %v1611
    %v1825 = vunpack.c.l.b16 %v1612
    %v1826 = vunpack.c.h.b16 %v1612
    %v1827 = vunpack.c.l.b16 %v1613
    %v1828 = vunpack.c.h.b16 %v1613
    %v1829 = vunpack.c.l.b16 %v1614
    %v1830 = vunpack.c.h.b16 %v1614
    %v1831 = vpack.c.b16 %v1707, %v1703
    %v1832 = vpack.c.b16 %v1708, %v1704
    %v1833 = vpack.c.b16 %v1709, %v1705
    %v1834 = vpack.c.b16 %v1710, %v1706
    %v1835 = vpack.c.b16 %v1715, %v1711
    %v1836 = vpack.c.b16 %v1716, %v1712
    %v1837 = vpack.c.b16 %v1717, %v1713
    %v1838 = vpack.c.b16 %v1718, %v1714
    %v1839 = vpack.c.b16 %v1723, %v1719
    %v1840 = vpack.c.b16 %v1724, %v1720
    %v1841 = vpack.c.b16 %v1725, %v1721
    %v1842 = vpack.c.b16 %v1726, %v1722
    %v1843 = vpack.c.b16 %v1731, %v1727
    %v1844 = vpack.c.b16 %v1732, %v1728
    %v1845 = vpack.c.b16 %v1733, %v1729
    %v1846 = vpack.c.b16 %v1734, %v1730
    %v1847 = vpack.c.b16 %v1739, %v1735
    %v1848 = vpack.c.b16 %v1740, %v1736
    %v1849 = vpack.c.b16 %v1741, %v1737
    %v1850 = vpack.c.b16 %v1742, %v1738
    %v1851 = vpack.c.b16 %v1747, %v1743
    %v1852 = vpack.c.b16 %v1748, %v1744
    %v1853 = vpack.c.b16 %v1749, %v1745
    %v1854 = vpack.c.b16 %v1750, %v1746
    %v1855 = vpack.c.b16 %v1755, %v1751
    %v1856 = vpack.c.b16 %v1756, %v1752
    %v1857 = vpack.c.b16 %v1757, %v1753
    %v1858 = vpack.c.b16 %v1758, %v1754
    %v1859 = vpack.c.b16 %v1763, %v1759
    %v1860 = vpack.c.b16 %v1764, %v1760
    %v1861 = vpack.c.b16 %v1765, %v1761
    %v1862 = vpack.c.b16 %v1766, %v1762
    %v1863 = vpack.c.b16 %v1771, %v1767
    %v1864 = vpack.c.b16 %v1772, %v1768
    %v1865 = vpack.c.b16 %v1773, %v1769
    %v1866 = vpack.c.b16 %v1774, %v1770
    %v1867 = vpack.c.b16 %v1779, %v1775
    %v1868 = vpack.c.b16 %v1780, %v1776
    %v1869 = vpack.c.b16 %v1781, %v1777
    %v1870 = vpack.c.b16 %v1782, %v1778
    %v1871 = vpack.c.b16 %v1787, %v1783
    %v1872 = vpack.c.b16 %v1788, %v1784
    %v1873 = vpack.c.b16 %v1789, %v1785
    %v1874 = vpack.c.b16 %v1790, %v1786
    %v1875 = vpack.c.b16 %v1795, %v1791
    %v1876 = vpack.c.b16 %v1796, %v1792
    %v1877 = vpack.c.b16 %v1797, %v1793
    %v1878 = vpack.c.b16 %v1798, %v1794
    %v1879 = vpack.c.b16 %v1803, %v1799
    %v1880 = vpack.c.b16 %v1804, %v1800
    %v1881 = vpack.c.b16 %v1805, %v1801
    %v1882 = vpack.c.b16 %v1806, %v1802
    %v1883 = vpack.c.b16 %v1811, %v1807
    %v1884 = vpack.c.b16 %v1812, %v1808
    %v1885 = vpack.c.b16 %v1813, %v1809
    %v1886 = vpack.c.b16 %v1814, %v1810
    %v1887 = vpack.c.b16 %v1819, %v1815
    %v1888 = vpack.c.b16 %v1820, %v1816
    %v1889 = vpack.c.b16 %v1821, %v1817
    %v1890 = vpack.c.b16 %v1822, %v1818
    %v1891 = vpack.c.b16 %v1827, %v1823
    %v1892 = vpack.c.b16 %v1828, %v1824
    %v1893 = vpack.c.b16 %v1829, %v1825
    %v1894 = vpack.c.b16 %v1830, %v1826
    %1959 = vmatprep.subr.bf16.mxu0 %v1832
    %1960 = vmatpush1.bf16.msra.mxu0 %v1831
    %1961 = vmatprep.subr.bf16.mxu0 %v1836
    %1962 = vmatpush1.bf16.msra.mxu0 %v1835
    %1963 = vmatprep.subr.bf16.mxu0 %v1840
    %1964 = vmatpush1.bf16.msra.mxu0 %v1839
    %1965 = vmatprep.subr.bf16.mxu0 %v1844
    %1966 = vmatpush1.bf16.msra.mxu0 %v1843
    %1967 = vmatprep.subr.bf16.mxu0 %v1848
    %1968 = vmatpush1.bf16.msra.mxu0 %v1847
    %1969 = vmatprep.subr.bf16.mxu0 %v1852
    %1970 = vmatpush1.bf16.msra.mxu0 %v1851
    %1971 = vmatprep.subr.bf16.mxu0 %v1856
    %1972 = vmatpush1.bf16.msra.mxu0 %v1855
    %1973 = vmatprep.subr.bf16.mxu0 %v1860
    %1974 = vmatpush1.bf16.msra.mxu0 %v1859
    %1975 = vmatprep.subr.bf16.mxu0 %v1864
    %1976 = vmatpush1.bf16.msra.mxu0 %v1863
    %1977 = vmatprep.subr.bf16.mxu0 %v1868
    %1978 = vmatpush1.bf16.msra.mxu0 %v1867
    %1979 = vmatprep.subr.bf16.mxu0 %v1872
    %1980 = vmatpush1.bf16.msra.mxu0 %v1871
    %1981 = vmatprep.subr.bf16.mxu0 %v1876
    %1982 = vmatpush1.bf16.msra.mxu0 %v1875
    %1983 = vmatprep.subr.bf16.mxu0 %v1880
    %1984 = vmatpush1.bf16.msra.mxu0 %v1879
    %1985 = vmatprep.subr.bf16.mxu0 %v1884
    %1986 = vmatpush1.bf16.msra.mxu0 %v1883
    %1987 = vmatprep.subr.bf16.mxu0 %v1888
    %1988 = vmatpush1.bf16.msra.mxu0 %v1887
    %1989 = vmatprep.subr.bf16.mxu0 %v1892
    %1990 = vmatpush1.bf16.msra.mxu0 %v1891
    %1991 = vmatprep.mubr.bf16.mxu0 %v1616
    %1992 = vmatmul.mubr.bf16.gmra.mrb[0].mxu0 %v1615
    %v1993 = vpop.f32.mrb[0].mxu0
    %v1994 = vadd.f32 %v1622, %v1993
    %v1995 = vpop.f32.mrb[0].mxu0
    %v1996 = vadd.f32 %v1626, %v1995
    %v1997 = vpop.f32.mrb[0].mxu0
    %v1998 = vadd.f32 %v1622, %v1997
    %v1999 = vpop.f32.mrb[0].mxu0
    %v2000 = vadd.f32 %v1626, %v1999
    %2001 = vdwg.mxu0
    %2002 = vmatprep.subr.bf16.mxu0 %v1834
    %2003 = vmatpush1.bf16.msra.mxu0 %v1833
    %2004 = vmatprep.subr.bf16.mxu0 %v1838
    %2005 = vmatpush1.bf16.msra.mxu0 %v1837
    %2006 = vmatprep.subr.bf16.mxu0 %v1842
    %2007 = vmatpush1.bf16.msra.mxu0 %v1841
    %2008 = vmatprep.subr.bf16.mxu0 %v1846
    %2009 = vmatpush1.bf16.msra.mxu0 %v1845
    %2010 = vmatprep.subr.bf16.mxu0 %v1850
    %2011 = vmatpush1.bf16.msra.mxu0 %v1849
    %2012 = vmatprep.subr.bf16.mxu0 %v1854
    %2013 = vmatpush1.bf16.msra.mxu0 %v1853
    %2014 = vmatprep.subr.bf16.mxu0 %v1858
    %2015 = vmatpush1.bf16.msra.mxu0 %v1857
    %2016 = vmatprep.subr.bf16.mxu0 %v1862
    %2017 = vmatpush1.bf16.msra.mxu0 %v1861
    %2018 = vmatprep.subr.bf16.mxu0 %v1866
    %2019 = vmatpush1.bf16.msra.mxu0 %v1865
    %2020 = vmatprep.subr.bf16.mxu0 %v1870
    %2021 = vmatpush1.bf16.msra.mxu0 %v1869
    %2022 = vmatprep.subr.bf16.mxu0 %v1874
    %2023 = vmatpush1.bf16.msra.mxu0 %v1873
    %2024 = vmatprep.subr.bf16.mxu0 %v1878
    %2025 = vmatpush1.bf16.msra.mxu0 %v1877
    %2026 = vmatprep.subr.bf16.mxu0 %v1882
    %2027 = vmatpush1.bf16.msra.mxu0 %v1881
    %2028 = vmatprep.subr.bf16.mxu0 %v1886
    %2029 = vmatpush1.bf16.msra.mxu0 %v1885
    %2030 = vmatprep.subr.bf16.mxu0 %v1890
    %2031 = vmatpush1.bf16.msra.mxu0 %v1889
    %2032 = vmatprep.subr.bf16.mxu0 %v1894
    %2033 = vmatpush1.bf16.msra.mxu0 %v1893
    %2034 = vmatprep.mubr.bf16.mxu0 %v1616
    %2035 = vmatmul.mubr.bf16.gmra.mrb[0].mxu0 %v1615
    %v2036 = vpop.f32.mrb[0].mxu0
    %v2037 = vadd.f32 %v1630, %v2036
    %v2038 = vpop.f32.mrb[0].mxu0
    %v2039 = vadd.f32 %v1634, %v2038
    %v2040 = vpop.f32.mrb[0].mxu0
    %v2041 = vadd.f32 %v1630, %v2040
    %v2042 = vpop.f32.mrb[0].mxu0
    %v2043 = vadd.f32 %v1634, %v2042
    %2044 = vdwg.mxu0
    %v2045 = vmax.f32 %v1994, 0.0
    %v2046 = vmax.f32 %v1996, 0.0
    %v2047 = vmax.f32 %v2037, 0.0
    %v2048 = vmax.f32 %v2039, 0.0
    %v2049 = vmax.f32 %v1998, 0.0
    %v2050 = vmax.f32 %v2000, 0.0
    %v2051 = vmax.f32 %v2041, 0.0
    %v2052 = vmax.f32 %v2043, 0.0
    %v2053 = vld [vmem:[#allocation10] sm:$0xff]
    %v2054 = vld [vmem:[#allocation10 + $0x8] sm:$0xff]
    %v2055 = vld [vmem:[#allocation10 + $0x10] sm:$0xff]
    %v2056 = vld [vmem:[#allocation10 + $0x18] sm:$0xff]
    %v2057 = vld [vmem:[#allocation10 + $0x20] sm:$0xff]
    %v2058 = vld [vmem:[#allocation10 + $0x28] sm:$0xff]
    %v2059 = vld [vmem:[#allocation10 + $0x30] sm:$0xff]
    %v2060 = vld [vmem:[#allocation10 + $0x38] sm:$0xff]
    %v2061 = vld [vmem:[#allocation10 + $0x40] sm:$0xff]
    %v2062 = vld [vmem:[#allocation10 + $0x48] sm:$0xff]
    %v2063 = vld [vmem:[#allocation10 + $0x50] sm:$0xff]
    %v2064 = vld [vmem:[#allocation10 + $0x58] sm:$0xff]
    %v2065 = vld [vmem:[#allocation10 + $0x60] sm:$0xff]
    %v2066 = vld [vmem:[#allocation10 + $0x68] sm:$0xff]
    %v2067 = vld [vmem:[#allocation10 + $0x70] sm:$0xff]
    %v2068 = vld [vmem:[#allocation10 + $0x78] sm:$0xff]
    %v2069 = vld [vmem:[#allocation10 + $0x80] sm:$0xff]
    %v2070 = vld [vmem:[#allocation10 + $0x88] sm:$0xff]
    %v2071 = vld [vmem:[#allocation10 + $0x90] sm:$0xff]
    %v2072 = vld [vmem:[#allocation10 + $0x98] sm:$0xff]
    %v2073 = vld [vmem:[#allocation10 + $0xa0] sm:$0xff]
    %v2074 = vld [vmem:[#allocation10 + $0xa8] sm:$0xff]
    %v2075 = vld [vmem:[#allocation10 + $0xb0] sm:$0xff]
    %v2076 = vld [vmem:[#allocation10 + $0xb8] sm:$0xff]
    %v2077 = vld [vmem:[#allocation10 + $0xc0] sm:$0xff]
    %v2078 = vld [vmem:[#allocation10 + $0xc8] sm:$0xff]
    %v2079 = vld [vmem:[#allocation10 + $0xd0] sm:$0xff]
    %v2080 = vld [vmem:[#allocation10 + $0xd8] sm:$0xff]
    %v2081 = vld [vmem:[#allocation10 + $0xe0] sm:$0xff]
    %v2082 = vld [vmem:[#allocation10 + $0xe8] sm:$0xff]
    %v2083 = vld [vmem:[#allocation10 + $0xf0] sm:$0xff]
    %v2084 = vld [vmem:[#allocation10 + $0xf8] sm:$0xff]
    %v2085 = vld [vmem:[#allocation10 + $0x100] sm:$0xff]
    %v2086 = vld [vmem:[#allocation10 + $0x108] sm:$0xff]
    %v2087 = vld [vmem:[#allocation10 + $0x110] sm:$0xff]
    %v2088 = vld [vmem:[#allocation10 + $0x118] sm:$0xff]
    %v2089 = vld [vmem:[#allocation10 + $0x120] sm:$0xff]
    %v2090 = vld [vmem:[#allocation10 + $0x128] sm:$0xff]
    %v2091 = vld [vmem:[#allocation10 + $0x130] sm:$0xff]
    %v2092 = vld [vmem:[#allocation10 + $0x138] sm:$0xff]
    %v2093 = vld [vmem:[#allocation10 + $0x140] sm:$0xff]
    %v2094 = vld [vmem:[#allocation10 + $0x148] sm:$0xff]
    %v2095 = vld [vmem:[#allocation10 + $0x150] sm:$0xff]
    %v2096 = vld [vmem:[#allocation10 + $0x158] sm:$0xff]
    %v2097 = vld [vmem:[#allocation10 + $0x160] sm:$0xff]
    %v2098 = vld [vmem:[#allocation10 + $0x168] sm:$0xff]
    %v2099 = vld [vmem:[#allocation10 + $0x170] sm:$0xff]
    %v2100 = vld [vmem:[#allocation10 + $0x178] sm:$0xff]
    %v2101 = vld [vmem:[#allocation10 + $0x180] sm:$0xff]
    %v2102 = vld [vmem:[#allocation10 + $0x188] sm:$0xff]
    %v2103 = vld [vmem:[#allocation10 + $0x190] sm:$0xff]
    %v2104 = vld [vmem:[#allocation10 + $0x198] sm:$0xff]
    %v2105 = vld [vmem:[#allocation10 + $0x1a0] sm:$0xff]
    %v2106 = vld [vmem:[#allocation10 + $0x1a8] sm:$0xff]
    %v2107 = vld [vmem:[#allocation10 + $0x1b0] sm:$0xff]
    %v2108 = vld [vmem:[#allocation10 + $0x1b8] sm:$0xff]
    %v2109 = vld [vmem:[#allocation10 + $0x1c0] sm:$0xff]
    %v2110 = vld [vmem:[#allocation10 + $0x1c8] sm:$0xff]
    %v2111 = vld [vmem:[#allocation10 + $0x1d0] sm:$0xff]
    %v2112 = vld [vmem:[#allocation10 + $0x1d8] sm:$0xff]
    %v2113 = vld [vmem:[#allocation10 + $0x1e0] sm:$0xff]
    %v2114 = vld [vmem:[#allocation10 + $0x1e8] sm:$0xff]
    %v2115 = vld [vmem:[#allocation10 + $0x1f0] sm:$0xff]
    %v2116 = vld [vmem:[#allocation10 + $0x1f8] sm:$0xff]
    %v2117 = vpack.c.bf16 %v2049, %v2045
    %v2118 = vpack.c.bf16 %v2050, %v2046
    %v2119 = vpack.c.bf16 %v2051, %v2047
    %v2120 = vpack.c.bf16 %v2052, %v2048
    %v2121 = vld [vmem:[%s13] sm:$0x3]
    %v2123 = vlaneseq
    %v2124 = vshrl.u32 %v2123, 7
    %v2125 = vsub.s32 0, %v2124
    %v2126 = vrot.slane %v2121, %v2125
    %v2127 = vlaneseq
    %v2128 = vshrl.u32 %v2127, 7
    %v2129 = vsub.s32 1, %v2128
    %v2130 = vrot.slane %v2121, %v2129
    %v2197 = vunpack.c.l.b16 %v2053
    %v2198 = vunpack.c.h.b16 %v2053
    %v2199 = vunpack.c.l.b16 %v2054
    %v2200 = vunpack.c.h.b16 %v2054
    %v2201 = vunpack.c.l.b16 %v2055
    %v2202 = vunpack.c.h.b16 %v2055
    %v2203 = vunpack.c.l.b16 %v2056
    %v2204 = vunpack.c.h.b16 %v2056
    %v2205 = vunpack.c.l.b16 %v2057
    %v2206 = vunpack.c.h.b16 %v2057
    %v2207 = vunpack.c.l.b16 %v2058
    %v2208 = vunpack.c.h.b16 %v2058
    %v2209 = vunpack.c.l.b16 %v2059
    %v2210 = vunpack.c.h.b16 %v2059
    %v2211 = vunpack.c.l.b16 %v2060
    %v2212 = vunpack.c.h.b16 %v2060
    %v2213 = vunpack.c.l.b16 %v2061
    %v2214 = vunpack.c.h.b16 %v2061
    %v2215 = vunpack.c.l.b16 %v2062
    %v2216 = vunpack.c.h.b16 %v2062
    %v2217 = vunpack.c.l.b16 %v2063
    %v2218 = vunpack.c.h.b16 %v2063
    %v2219 = vunpack.c.l.b16 %v2064
    %v2220 = vunpack.c.h.b16 %v2064
    %v2221 = vunpack.c.l.b16 %v2065
    %v2222 = vunpack.c.h.b16 %v2065
    %v2223 = vunpack.c.l.b16 %v2066
    %v2224 = vunpack.c.h.b16 %v2066
    %v2225 = vunpack.c.l.b16 %v2067
    %v2226 = vunpack.c.h.b16 %v2067
    %v2227 = vunpack.c.l.b16 %v2068
    %v2228 = vunpack.c.h.b16 %v2068
    %v2229 = vunpack.c.l.b16 %v2069
    %v2230 = vunpack.c.h.b16 %v2069
    %v2231 = vunpack.c.l.b16 %v2070
    %v2232 = vunpack.c.h.b16 %v2070
    %v2233 = vunpack.c.l.b16 %v2071
    %v2234 = vunpack.c.h.b16 %v2071
    %v2235 = vunpack.c.l.b16 %v2072
    %v2236 = vunpack.c.h.b16 %v2072
    %v2237 = vunpack.c.l.b16 %v2073
    %v2238 = vunpack.c.h.b16 %v2073
    %v2239 = vunpack.c.l.b16 %v2074
    %v2240 = vunpack.c.h.b16 %v2074
    %v2241 = vunpack.c.l.b16 %v2075
    %v2242 = vunpack.c.h.b16 %v2075
    %v2243 = vunpack.c.l.b16 %v2076
    %v2244 = vunpack.c.h.b16 %v2076
    %v2245 = vunpack.c.l.b16 %v2077
    %v2246 = vunpack.c.h.b16 %v2077
    %v2247 = vunpack.c.l.b16 %v2078
    %v2248 = vunpack.c.h.b16 %v2078
    %v2249 = vunpack.c.l.b16 %v2079
    %v2250 = vunpack.c.h.b16 %v2079
    %v2251 = vunpack.c.l.b16 %v2080
    %v2252 = vunpack.c.h.b16 %v2080
    %v2253 = vunpack.c.l.b16 %v2081
    %v2254 = vunpack.c.h.b16 %v2081
    %v2255 = vunpack.c.l.b16 %v2082
    %v2256 = vunpack.c.h.b16 %v2082
    %v2257 = vunpack.c.l.b16 %v2083
    %v2258 = vunpack.c.h.b16 %v2083
    %v2259 = vunpack.c.l.b16 %v2084
    %v2260 = vunpack.c.h.b16 %v2084
    %v2261 = vunpack.c.l.b16 %v2085
    %v2262 = vunpack.c.h.b16 %v2085
    %v2263 = vunpack.c.l.b16 %v2086
    %v2264 = vunpack.c.h.b16 %v2086
    %v2265 = vunpack.c.l.b16 %v2087
    %v2266 = vunpack.c.h.b16 %v2087
    %v2267 = vunpack.c.l.b16 %v2088
    %v2268 = vunpack.c.h.b16 %v2088
    %v2269 = vunpack.c.l.b16 %v2089
    %v2270 = vunpack.c.h.b16 %v2089
    %v2271 = vunpack.c.l.b16 %v2090
    %v2272 = vunpack.c.h.b16 %v2090
    %v2273 = vunpack.c.l.b16 %v2091
    %v2274 = vunpack.c.h.b16 %v2091
    %v2275 = vunpack.c.l.b16 %v2092
    %v2276 = vunpack.c.h.b16 %v2092
    %v2277 = vunpack.c.l.b16 %v2093
    %v2278 = vunpack.c.h.b16 %v2093
    %v2279 = vunpack.c.l.b16 %v2094
    %v2280 = vunpack.c.h.b16 %v2094
    %v2281 = vunpack.c.l.b16 %v2095
    %v2282 = vunpack.c.h.b16 %v2095
    %v2283 = vunpack.c.l.b16 %v2096
    %v2284 = vunpack.c.h.b16 %v2096
    %v2285 = vunpack.c.l.b16 %v2097
    %v2286 = vunpack.c.h.b16 %v2097
    %v2287 = vunpack.c.l.b16 %v2098
    %v2288 = vunpack.c.h.b16 %v2098
    %v2289 = vunpack.c.l.b16 %v2099
    %v2290 = vunpack.c.h.b16 %v2099
    %v2291 = vunpack.c.l.b16 %v2100
    %v2292 = vunpack.c.h.b16 %v2100
    %v2293 = vunpack.c.l.b16 %v2101
    %v2294 = vunpack.c.h.b16 %v2101
    %v2295 = vunpack.c.l.b16 %v2102
    %v2296 = vunpack.c.h.b16 %v2102
    %v2297 = vunpack.c.l.b16 %v2103
    %v2298 = vunpack.c.h.b16 %v2103
    %v2299 = vunpack.c.l.b16 %v2104
    %v2300 = vunpack.c.h.b16 %v2104
    %v2301 = vunpack.c.l.b16 %v2105
    %v2302 = vunpack.c.h.b16 %v2105
    %v2303 = vunpack.c.l.b16 %v2106
    %v2304 = vunpack.c.h.b16 %v2106
    %v2305 = vunpack.c.l.b16 %v2107
    %v2306 = vunpack.c.h.b16 %v2107
    %v2307 = vunpack.c.l.b16 %v2108
    %v2308 = vunpack.c.h.b16 %v2108
    %v2309 = vunpack.c.l.b16 %v2109
    %v2310 = vunpack.c.h.b16 %v2109
    %v2311 = vunpack.c.l.b16 %v2110
    %v2312 = vunpack.c.h.b16 %v2110
    %v2313 = vunpack.c.l.b16 %v2111
    %v2314 = vunpack.c.h.b16 %v2111
    %v2315 = vunpack.c.l.b16 %v2112
    %v2316 = vunpack.c.h.b16 %v2112
    %v2317 = vunpack.c.l.b16 %v2113
    %v2318 = vunpack.c.h.b16 %v2113
    %v2319 = vunpack.c.l.b16 %v2114
    %v2320 = vunpack.c.h.b16 %v2114
    %v2321 = vunpack.c.l.b16 %v2115
    %v2322 = vunpack.c.h.b16 %v2115
    %v2323 = vunpack.c.l.b16 %v2116
    %v2324 = vunpack.c.h.b16 %v2116
    %v2325 = vpack.c.b16 %v2199, %v2197
    %v2326 = vpack.c.b16 %v2200, %v2198
    %v2327 = vpack.c.b16 %v2203, %v2201
    %v2328 = vpack.c.b16 %v2204, %v2202
    %v2329 = vpack.c.b16 %v2207, %v2205
    %v2330 = vpack.c.b16 %v2208, %v2206
    %v2331 = vpack.c.b16 %v2211, %v2209
    %v2332 = vpack.c.b16 %v2212, %v2210
    %v2333 = vpack.c.b16 %v2215, %v2213
    %v2334 = vpack.c.b16 %v2216, %v2214
    %v2335 = vpack.c.b16 %v2219, %v2217
    %v2336 = vpack.c.b16 %v2220, %v2218
    %v2337 = vpack.c.b16 %v2223, %v2221
    %v2338 = vpack.c.b16 %v2224, %v2222
    %v2339 = vpack.c.b16 %v2227, %v2225
    %v2340 = vpack.c.b16 %v2228, %v2226
    %v2341 = vpack.c.b16 %v2231, %v2229
    %v2342 = vpack.c.b16 %v2232, %v2230
    %v2343 = vpack.c.b16 %v2235, %v2233
    %v2344 = vpack.c.b16 %v2236, %v2234
    %v2345 = vpack.c.b16 %v2239, %v2237
    %v2346 = vpack.c.b16 %v2240, %v2238
    %v2347 = vpack.c.b16 %v2243, %v2241
    %v2348 = vpack.c.b16 %v2244, %v2242
    %v2349 = vpack.c.b16 %v2247, %v2245
    %v2350 = vpack.c.b16 %v2248, %v2246
    %v2351 = vpack.c.b16 %v2251, %v2249
    %v2352 = vpack.c.b16 %v2252, %v2250
    %v2353 = vpack.c.b16 %v2255, %v2253
    %v2354 = vpack.c.b16 %v2256, %v2254
    %v2355 = vpack.c.b16 %v2259, %v2257
    %v2356 = vpack.c.b16 %v2260, %v2258
    %v2357 = vpack.c.b16 %v2263, %v2261
    %v2358 = vpack.c.b16 %v2264, %v2262
    %v2359 = vpack.c.b16 %v2267, %v2265
    %v2360 = vpack.c.b16 %v2268, %v2266
    %v2361 = vpack.c.b16 %v2271, %v2269
    %v2362 = vpack.c.b16 %v2272, %v2270
    %v2363 = vpack.c.b16 %v2275, %v2273
    %v2364 = vpack.c.b16 %v2276, %v2274
    %v2365 = vpack.c.b16 %v2279, %v2277
    %v2366 = vpack.c.b16 %v2280, %v2278
    %v2367 = vpack.c.b16 %v2283, %v2281
    %v2368 = vpack.c.b16 %v2284, %v2282
    %v2369 = vpack.c.b16 %v2287, %v2285
    %v2370 = vpack.c.b16 %v2288, %v2286
    %v2371 = vpack.c.b16 %v2291, %v2289
    %v2372 = vpack.c.b16 %v2292, %v2290
    %v2373 = vpack.c.b16 %v2295, %v2293
    %v2374 = vpack.c.b16 %v2296, %v2294
    %v2375 = vpack.c.b16 %v2299, %v2297
    %v2376 = vpack.c.b16 %v2300, %v2298
    %v2377 = vpack.c.b16 %v2303, %v2301
    %v2378 = vpack.c.b16 %v2304, %v2302
    %v2379 = vpack.c.b16 %v2307, %v2305
    %v2380 = vpack.c.b16 %v2308, %v2306
    %v2381 = vpack.c.b16 %v2311, %v2309
    %v2382 = vpack.c.b16 %v2312, %v2310
    %v2383 = vpack.c.b16 %v2315, %v2313
    %v2384 = vpack.c.b16 %v2316, %v2314
    %v2385 = vpack.c.b16 %v2319, %v2317
    %v2386 = vpack.c.b16 %v2320, %v2318
    %v2387 = vpack.c.b16 %v2323, %v2321
    %v2388 = vpack.c.b16 %v2324, %v2322
    %2453 = vmatprep.subr.bf16.mxu0 %v2326
    %2454 = vmatpush1.bf16.msra.mxu0 %v2325
    %2455 = vmatprep.subr.bf16.mxu0 %v2328
    %2456 = vmatpush1.bf16.msra.mxu0 %v2327
    %2457 = vmatprep.subr.bf16.mxu0 %v2330
    %2458 = vmatpush1.bf16.msra.mxu0 %v2329
    %2459 = vmatprep.subr.bf16.mxu0 %v2332
    %2460 = vmatpush1.bf16.msra.mxu0 %v2331
    %2461 = vmatprep.subr.bf16.mxu0 %v2334
    %2462 = vmatpush1.bf16.msra.mxu0 %v2333
    %2463 = vmatprep.subr.bf16.mxu0 %v2336
    %2464 = vmatpush1.bf16.msra.mxu0 %v2335
    %2465 = vmatprep.subr.bf16.mxu0 %v2338
    %2466 = vmatpush1.bf16.msra.mxu0 %v2337
    %2467 = vmatprep.subr.bf16.mxu0 %v2340
    %2468 = vmatpush1.bf16.msra.mxu0 %v2339
    %2469 = vmatprep.subr.bf16.mxu0 %v2342
    %2470 = vmatpush1.bf16.msra.mxu0 %v2341
    %2471 = vmatprep.subr.bf16.mxu0 %v2344
    %2472 = vmatpush1.bf16.msra.mxu0 %v2343
    %2473 = vmatprep.subr.bf16.mxu0 %v2346
    %2474 = vmatpush1.bf16.msra.mxu0 %v2345
    %2475 = vmatprep.subr.bf16.mxu0 %v2348
    %2476 = vmatpush1.bf16.msra.mxu0 %v2347
    %2477 = vmatprep.subr.bf16.mxu0 %v2350
    %2478 = vmatpush1.bf16.msra.mxu0 %v2349
    %2479 = vmatprep.subr.bf16.mxu0 %v2352
    %2480 = vmatpush1.bf16.msra.mxu0 %v2351
    %2481 = vmatprep.subr.bf16.mxu0 %v2354
    %2482 = vmatpush1.bf16.msra.mxu0 %v2353
    %2483 = vmatprep.subr.bf16.mxu0 %v2356
    %2484 = vmatpush1.bf16.msra.mxu0 %v2355
    %2485 = vmatprep.mubr.bf16.mxu0 %v2118
    %2486 = vmatmul.mubr.bf16.gmra.mrb[0].mxu0 %v2117
    %v2487 = vpop.f32.mrb[0].mxu0
    %v2488 = vadd.f32 %v2126, %v2487
    %v2489 = vpop.f32.mrb[0].mxu0
    %v2490 = vadd.f32 %v2130, %v2489
    %v2491 = vpop.f32.mrb[0].mxu0
    %v2492 = vadd.f32 %v2126, %v2491
    %v2493 = vpop.f32.mrb[0].mxu0
    %v2494 = vadd.f32 %v2130, %v2493
    %2495 = vdwg.mxu0
    %2496 = vmatprep.subr.bf16.mxu0 %v2358
    %2497 = vmatpush1.bf16.msra.mxu0 %v2357
    %2498 = vmatprep.subr.bf16.mxu0 %v2360
    %2499 = vmatpush1.bf16.msra.mxu0 %v2359
    %2500 = vmatprep.subr.bf16.mxu0 %v2362
    %2501 = vmatpush1.bf16.msra.mxu0 %v2361
    %2502 = vmatprep.subr.bf16.mxu0 %v2364
    %2503 = vmatpush1.bf16.msra.mxu0 %v2363
    %2504 = vmatprep.subr.bf16.mxu0 %v2366
    %2505 = vmatpush1.bf16.msra.mxu0 %v2365
    %2506 = vmatprep.subr.bf16.mxu0 %v2368
    %2507 = vmatpush1.bf16.msra.mxu0 %v2367
    %2508 = vmatprep.subr.bf16.mxu0 %v2370
    %2509 = vmatpush1.bf16.msra.mxu0 %v2369
    %2510 = vmatprep.subr.bf16.mxu0 %v2372
    %2511 = vmatpush1.bf16.msra.mxu0 %v2371
    %2512 = vmatprep.subr.bf16.mxu0 %v2374
    %2513 = vmatpush1.bf16.msra.mxu0 %v2373
    %2514 = vmatprep.subr.bf16.mxu0 %v2376
    %2515 = vmatpush1.bf16.msra.mxu0 %v2375
    %2516 = vmatprep.subr.bf16.mxu0 %v2378
    %2517 = vmatpush1.bf16.msra.mxu0 %v2377
    %2518 = vmatprep.subr.bf16.mxu0 %v2380
    %2519 = vmatpush1.bf16.msra.mxu0 %v2379
    %2520 = vmatprep.subr.bf16.mxu0 %v2382
    %2521 = vmatpush1.bf16.msra.mxu0 %v2381
    %2522 = vmatprep.subr.bf16.mxu0 %v2384
    %2523 = vmatpush1.bf16.msra.mxu0 %v2383
    %2524 = vmatprep.subr.bf16.mxu0 %v2386
    %2525 = vmatpush1.bf16.msra.mxu0 %v2385
    %2526 = vmatprep.subr.bf16.mxu0 %v2388
    %2527 = vmatpush1.bf16.msra.mxu0 %v2387
    %2528 = vmatprep.mubr.bf16.mxu0 %v2120
    %2529 = vmatmul.mubr.bf16.gmra.mrb[0].mxu0 %v2119
    %v2530 = vpop.f32.mrb[0].mxu0
    %v2531 = vadd.f32 %v2488, %v2530
    %v2532 = vpop.f32.mrb[0].mxu0
    %v2533 = vadd.f32 %v2490, %v2532
    %v2534 = vpop.f32.mrb[0].mxu0
    %v2535 = vadd.f32 %v2492, %v2534
    %v2536 = vpop.f32.mrb[0].mxu0
    %v2537 = vadd.f32 %v2494, %v2536
    %2538 = vdwg.mxu0
    %2539 = vst [vmem:[%s14] sm:$0xff] %v2531
    %2540 = vst [vmem:[%s14 + $0x8] sm:$0xff] %v2533
    %2541 = vst [vmem:[%s14 + $0x10] sm:$0xff] %v2535
    %2542 = vst [vmem:[%s14 + $0x18] sm:$0xff] %v2537
    %2543 = vst [vmem:[%s15] sm:$0xff] %v1375
    %2544 = vst [vmem:[%s15 + $0x8] sm:$0xff] %v1377
    %2545 = vst [vmem:[%s15 + $0x10] sm:$0xff] %v1379
    %2546 = vst [vmem:[%s15 + $0x18] sm:$0xff] %v1381
    // Predicated region
    $region82: #{vae_forward.1} parent=1 // pred_check
      _
    $region83: #{vae_forward.1} parent=1 // pred_check_branch
      %2548 = sbr.rel (0) target = $region85
    $region84: #{vae_forward.1} parent=1 // pred_region
      _
    $region85: #{vae_forward.1} parent=1 // pred_fallthru
      _
    // Predicated region
    $region86: #{vae_forward.1} parent=1 // pred_check
      _
    $region87: #{vae_forward.1} parent=1 // pred_check_branch
      %2550 = sbr.rel (0) target = $region89
    $region88: #{vae_forward.1} parent=1 // pred_region
      _
    $region89: #{vae_forward.1} parent=1 // pred_fallthru
      _
    // Predicated region
    $region90: #{vae_forward.1} parent=1 // pred_check
      _
    $region91: #{vae_forward.1} parent=1 // pred_check_branch
      %2552 = sbr.rel (0) target = $region93
    $region92: #{vae_forward.1} parent=1 // pred_region
      _
    $region93: #{vae_forward.1} parent=1 // pred_fallthru
      _
    // Predicated region
    $region94: #{vae_forward.1} parent=1 // pred_check
      _
    $region95: #{vae_forward.1} parent=1 // pred_check_branch
      %2554 = sbr.rel (0) target = $region97
    $region96: #{vae_forward.1} parent=1 // pred_region
      _
    $region97: #{vae_forward.1} parent=1 // pred_fallthru
      _
    %2555 = vsyncpa [#allocation3], 1
    %2556 = vsyncpa [#allocation5], 1
    %2557 = vsyncpa [#allocation8], 1
    %2558 = vsyncpa [#allocation11], 1

</llo_original>
